<compile_context>
chip_gen: v7x
topology: tpu7x:2x2x1
jax: 0.10.0
libtpu: 0.0.40
codegen_flags: <defaults>
</compile_context>

<pallas_src>
import functools
import math

import jax
import jax.numpy as jnp
import numpy as np
from jax import lax
from jax.experimental import pallas as pl
from jax.experimental.pallas import tpu as pltpu

LN_EPS = 1e-5  # PyTorch nn.LayerNorm default


def _layernorm_f32(x, gamma, beta):
    mu = jnp.mean(x, axis=-1, keepdims=True)
    var = jnp.mean((x - mu) ** 2, axis=-1, keepdims=True)
    return (x - mu) * lax.rsqrt(var + LN_EPS) * gamma + beta


def _gelu_exact(x):
    # PyTorch nn.GELU default is the exact erf formulation.
    return 0.5 * x * (1.0 + lax.erf(x * (1.0 / math.sqrt(2.0))))


def vit_block_kernel(x_ref, ln1_w_ref, ln1_b_ref, w_in_ref, b_in_ref,
                     w_out_ref, b_out_ref, ln2_w_ref, ln2_b_ref,
                     w1_ref, b1_ref, w2_ref, b2_ref, o_ref,
                     *, num_heads, compute_dtype, batched_heads, approx_recip):
    # x block: (S, E) when the batch dim is squeezed by the BlockSpec,
    # (1, S, E) in the conservative fallback layout.
    x = x_ref[...] if len(x_ref.shape) == 2 else x_ref[0]
    x = x.astype(jnp.float32)
    S, E = x.shape
    H = num_heads
    Dh = E // H
    scale = 1.0 / math.sqrt(Dh)
    cdt = compute_dtype

    # Hoist the small parameter reads once (no re-broadcast later).
    ln1_w = ln1_w_ref[...]
    ln1_b = ln1_b_ref[...]
    ln2_w = ln2_w_ref[...]
    ln2_b = ln2_b_ref[...]
    b_in = b_in_ref[...]
    b_out = b_out_ref[...]
    b1 = b1_ref[...]
    b2 = b2_ref[...]

    # ---------------- MSA branch ----------------
    xn = _layernorm_f32(x, ln1_w, ln1_b).astype(cdt)
    qkv = jnp.dot(xn, w_in_ref[...], preferred_element_type=jnp.float32) + b_in
    q2 = (qkv[:, 0 * E:1 * E] * scale).astype(cdt)
    k2 = qkv[:, 1 * E:2 * E].astype(cdt)
    v2 = qkv[:, 2 * E:3 * E].astype(cdt)

    if batched_heads:
        # (S, E) -> (H, S, Dh) once per tensor, then batched MXU matmuls.
        q3 = pltpu.einshape("shd->hsd", q2.reshape(S, H, Dh))
        k3 = pltpu.einshape("shd->hsd", k2.reshape(S, H, Dh))
        v3 = pltpu.einshape("shd->hsd", v2.reshape(S, H, Dh))
        s = jnp.einsum("hqd,hkd->hqk", q3, k3,
                       preferred_element_type=jnp.float32)            # (H,S,S) f32
        s = s - jnp.max(s, axis=-1, keepdims=True)
        p = jnp.exp(s)
        l = jnp.sum(p, axis=-1, keepdims=True)                        # (H,S,1)
        o = jnp.einsum("hqk,hkd->hqd", p.astype(cdt), v3,
                       preferred_element_type=jnp.float32)            # (H,S,Dh)
        o = o * pl.reciprocal(l, approx=approx_recip)  # normalize after p@v
        attn = pltpu.einshape("hsd->shd", o).reshape(S, E)
    else:
        outs = []
        for h in range(H):  # static unrolled per-head loop (fallback path)
            qh = q2[:, h * Dh:(h + 1) * Dh]
            kh = k2[:, h * Dh:(h + 1) * Dh]
            vh = v2[:, h * Dh:(h + 1) * Dh]
            s = lax.dot_general(qh, kh, (((1,), (1,)), ((), ())),
                                preferred_element_type=jnp.float32)   # (S,S)
            s = s - jnp.max(s, axis=-1, keepdims=True)
            p = jnp.exp(s)
            l = jnp.sum(p, axis=-1, keepdims=True)
            oh = jnp.dot(p.astype(cdt), vh, preferred_element_type=jnp.float32)
            outs.append(oh * pl.reciprocal(l, approx=approx_recip))
        attn = jnp.concatenate(outs, axis=-1)                         # (S,E)

    attn = jnp.dot(attn.astype(cdt), w_out_ref[...],
                   preferred_element_type=jnp.float32) + b_out
    # TODO(synk): attention/projection dropout skipped (eval-mode identity).
    x1 = x + attn

    # ---------------- MLP branch ----------------
    xn2 = _layernorm_f32(x1, ln2_w, ln2_b).astype(cdt)
    h1 = jnp.dot(xn2, w1_ref[...], preferred_element_type=jnp.float32) + b1
    h1 = _gelu_exact(h1).astype(cdt)          # exact erf GELU in f32, cast after
    h2 = jnp.dot(h1, w2_ref[...], preferred_element_type=jnp.float32) + b2

    y = (x1 + h2).astype(o_ref.dtype)
    if len(o_ref.shape) == 2:
        o_ref[...] = y
    else:
        o_ref[0] = y


def _prep_params(params, compute_dtype):
    """Pre-transpose weights to (in, out) and cast matmul operands once."""
    f32 = jnp.float32
    cdt = compute_dtype
    return (
        params["ln1_w"].astype(f32), params["ln1_b"].astype(f32),
        params["w_in"].T.astype(cdt), params["b_in"].astype(f32),
        params["w_out"].T.astype(cdt), params["b_out"].astype(f32),
        params["ln2_w"].astype(f32), params["ln2_b"].astype(f32),
        params["w1"].T.astype(cdt), params["b1"].astype(f32),
        params["w2"].T.astype(cdt), params["b2"].astype(f32),
    )


def _vit_block_call(x_sbe, weights, num_heads, compute_dtype, optimized):
    S, B, E = x_sbe.shape
    mlp_dim = weights[8].shape[1]                 # w1_t: (E, mlp_dim)
    approx_recip = compute_dtype != jnp.float32   # keep exact divide in f32 mode

    kernel = functools.partial(
        vit_block_kernel, num_heads=num_heads, compute_dtype=compute_dtype,
        batched_heads=optimized, approx_recip=approx_recip)

    def weight_spec(shape):
        ndim = len(shape)
        index_map = lambda b, _n=ndim: (0,) * _n
        if optimized:
            # Constant index_map: single-buffer resident weights (saves VMEM).
            return pl.BlockSpec(shape, index_map, pipeline_mode=pl.Buffered(1))
        return pl.BlockSpec(shape, index_map)

    weight_specs = [weight_spec(tuple(w.shape)) for w in weights]

    # Explicit VMEM budget: resident weights + double-buffered x/out blocks +
    # activation working set, with headroom, capped below physical VMEM.
    param_bytes = sum(int(w.size) * w.dtype.itemsize for w in weights)
    act_bytes = 8 * S * max(3 * E, mlp_dim) * 4
    needed = ((1 if optimized else 2) * param_bytes
              + 4 * S * E * x_sbe.dtype.itemsize + act_bytes + (8 << 20))
    try:
        phys_vmem = pltpu.get_tpu_info().vmem_capacity_bytes
    except Exception:
        phys_vmem = 64 << 20                      # conservative (v7x per-TC)
    vmem_limit = int(max(32 << 20, min(needed, int(0.9 * phys_vmem))))

    compiler_params = pltpu.CompilerParams(
        dimension_semantics=("parallel",),        # batch steps shard across TCs
        vmem_limit_bytes=vmem_limit)

    if optimized:
        # Keep PyTorch's (seq, batch, embed) layout in HBM; absorb the batch
        # "transpose" into the BlockSpec by squeezing the middle batch dim.
        x_in = x_sbe
        x_spec = pl.BlockSpec((S, None, E), lambda b: (0, b, 0))
        out_shape = jax.ShapeDtypeStruct((S, B, E), x_sbe.dtype)
        out_spec = pl.BlockSpec((S, None, E), lambda b: (0, b, 0))
    else:
        x_in = jnp.transpose(x_sbe, (1, 0, 2))    # (B, S, E)
        x_spec = pl.BlockSpec((1, S, E), lambda b: (b, 0, 0))
        out_shape = jax.ShapeDtypeStruct((B, S, E), x_sbe.dtype)
        out_spec = pl.BlockSpec((1, S, E), lambda b: (b, 0, 0))

    out = pl.pallas_call(
        kernel,
        out_shape=out_shape,
        grid=(B,),
        in_specs=[x_spec] + weight_specs,
        out_specs=out_spec,
        compiler_params=compiler_params,
    )(x_in, *weights)

    if not optimized:
        out = jnp.transpose(out, (1, 0, 2))       # back to (S, B, E)
    return out


def vit_block(x_sbe, params, num_heads, compute_dtype=jnp.bfloat16):
    """ViTBlock forward. x_sbe: (seq, batch, embed), like PyTorch batch_first=False."""
    weights = _prep_params(params, compute_dtype)
    try:
        out = _vit_block_call(x_sbe, weights, num_heads, compute_dtype,
                              optimized=True)
        return jax.block_until_ready(out)
    except Exception:
        # Conservative fallback (same math) if the installed Pallas rejects
        # Buffered(1) / squeezed-middle-dim specs / einshape.
        out = _vit_block_call(x_sbe, weights, num_heads, compute_dtype,
                              optimized=False)
        return jax.block_until_ready(out)


def vit_block_ref(x_sbe, p, num_heads):
    """Pure-JAX f32 reference matching PyTorch ViTBlock.forward (eval mode)."""
    S, B, E = x_sbe.shape
    x = jnp.transpose(x_sbe, (1, 0, 2))

    def ln(z, g, b):
        mu = z.mean(-1, keepdims=True)
        var = ((z - mu) ** 2).mean(-1, keepdims=True)
        return (z - mu) / jnp.sqrt(var + LN_EPS) * g + b

    xn = ln(x, p["ln1_w"][0], p["ln1_b"][0])
    qkv = xn @ p["w_in"].T + p["b_in"][0]
    q, k, v = jnp.split(qkv, 3, axis=-1)
    Dh = E // num_heads
    qh = q.reshape(B, S, num_heads, Dh).transpose(0, 2, 1, 3)
    kh = k.reshape(B, S, num_heads, Dh).transpose(0, 2, 1, 3)
    vh = v.reshape(B, S, num_heads, Dh).transpose(0, 2, 1, 3)
    s = (qh / math.sqrt(Dh)) @ kh.transpose(0, 1, 3, 2)
    a = jax.nn.softmax(s, axis=-1)
    o = (a @ vh).transpose(0, 2, 1, 3).reshape(B, S, E)
    attn = o @ p["w_out"].T + p["b_out"][0]
    x1 = x + attn
    xn2 = ln(x1, p["ln2_w"][0], p["ln2_b"][0])
    h = jax.nn.gelu(xn2 @ p["w1"].T + p["b1"][0], approximate=False)
    x2 = x1 + h @ p["w2"].T + p["b2"][0]
    return jnp.transpose(x2, (1, 0, 2))


def make_params(key, embed_dim, mlp_dim):
    ks = jax.random.split(key, 6)
    scale = 0.05
    return {
        "ln1_w": jnp.ones((1, embed_dim), jnp.float32),
        "ln1_b": jnp.zeros((1, embed_dim), jnp.float32),
        "w_in": scale * jax.random.normal(ks[0], (3 * embed_dim, embed_dim), jnp.float32),
        "b_in": scale * jax.random.normal(ks[1], (1, 3 * embed_dim), jnp.float32),
        "w_out": scale * jax.random.normal(ks[2], (embed_dim, embed_dim), jnp.float32),
        "b_out": scale * jax.random.normal(ks[3], (1, embed_dim), jnp.float32),
        "ln2_w": jnp.ones((1, embed_dim), jnp.float32),
        "ln2_b": jnp.zeros((1, embed_dim), jnp.float32),
        "w1": scale * jax.random.normal(ks[4], (mlp_dim, embed_dim), jnp.float32),
        "b1": jnp.zeros((1, mlp_dim), jnp.float32),
        "w2": scale * jax.random.normal(ks[5], (embed_dim, mlp_dim), jnp.float32),
        "b2": jnp.zeros((1, embed_dim), jnp.float32),
    }


if __name__ == "__main__":
    SEQ, BATCH, EMBED, HEADS, MLP = 8, 2, 32, 4, 64

    key = jax.random.PRNGKey(0)
    k_x, k_p = jax.random.split(key)
    x = jax.random.normal(k_x, (SEQ, BATCH, EMBED), jnp.float32)  # (seq, batch, embed)
    params = make_params(k_p, EMBED, MLP)

    ref = vit_block_ref(x, params, HEADS)

    # Exact-precision configuration (f32 matmuls): tight tolerance vs f32 ref.
    out_f32 = vit_block(x, params, HEADS, compute_dtype=jnp.float32)
    np.testing.assert_allclose(np.asarray(out_f32), np.asarray(ref),
                               rtol=1e-5, atol=1e-5)

    # Optimized configuration (bf16 matmul operands, f32 accumulation/stats).
    out_bf16 = vit_block(x, params, HEADS, compute_dtype=jnp.bfloat16)
    np.testing.assert_allclose(np.asarray(out_bf16), np.asarray(ref),
                               rtol=2e-2, atol=2e-2)

    print("KERNEL_OK")
</pallas_src>

<mosaic_0001>
module attributes {stable_mosaic.version = 11 : i64} {
  func.func @vit_block_kernel(%arg0: i32, %arg1: memref<1x8x32xf32, #tpu.memory_space<vmem>>, %arg2: memref<1x32xf32, #tpu.memory_space<vmem>>, %arg3: memref<1x32xf32, #tpu.memory_space<vmem>>, %arg4: memref<32x96xf32, #tpu.memory_space<vmem>>, %arg5: memref<1x96xf32, #tpu.memory_space<vmem>>, %arg6: memref<32x32xf32, #tpu.memory_space<vmem>>, %arg7: memref<1x32xf32, #tpu.memory_space<vmem>>, %arg8: memref<1x32xf32, #tpu.memory_space<vmem>>, %arg9: memref<1x32xf32, #tpu.memory_space<vmem>>, %arg10: memref<32x64xf32, #tpu.memory_space<vmem>>, %arg11: memref<1x64xf32, #tpu.memory_space<vmem>>, %arg12: memref<64x32xf32, #tpu.memory_space<vmem>>, %arg13: memref<1x32xf32, #tpu.memory_space<vmem>>, %arg14: memref<1x8x32xf32, #tpu.memory_space<vmem>>) attributes {dimension_semantics = [#tpu.dimension_semantics<parallel>], iteration_bounds = array<i64: 2>, scalar_prefetch = 0 : i64, scratch_operands = 0 : i64, tpu.core_type = #tpu.core_type<tc>, window_params = [{transform_indices = @transform_0, window_bounds = array<i64: 1, 8, 32>}, {pipeline_mode = #tpu.pipeline_mode<synchronous>, transform_indices = @transform_1, window_bounds = array<i64: 1, 32>}, {pipeline_mode = #tpu.pipeline_mode<synchronous>, transform_indices = @transform_2, window_bounds = array<i64: 1, 32>}, {pipeline_mode = #tpu.pipeline_mode<synchronous>, transform_indices = @transform_3, window_bounds = array<i64: 32, 96>}, {pipeline_mode = #tpu.pipeline_mode<synchronous>, transform_indices = @transform_4, window_bounds = array<i64: 1, 96>}, {pipeline_mode = #tpu.pipeline_mode<synchronous>, transform_indices = @transform_5, window_bounds = array<i64: 32, 32>}, {pipeline_mode = #tpu.pipeline_mode<synchronous>, transform_indices = @transform_6, window_bounds = array<i64: 1, 32>}, {pipeline_mode = #tpu.pipeline_mode<synchronous>, transform_indices = @transform_7, window_bounds = array<i64: 1, 32>}, {pipeline_mode = #tpu.pipeline_mode<synchronous>, transform_indices = @transform_8, window_bounds = array<i64: 1, 32>}, {pipeline_mode = #tpu.pipeline_mode<synchronous>, transform_indices = @transform_9, window_bounds = array<i64: 32, 64>}, {pipeline_mode = #tpu.pipeline_mode<synchronous>, transform_indices = @transform_10, window_bounds = array<i64: 1, 64>}, {pipeline_mode = #tpu.pipeline_mode<synchronous>, transform_indices = @transform_11, window_bounds = array<i64: 64, 32>}, {pipeline_mode = #tpu.pipeline_mode<synchronous>, transform_indices = @transform_12, window_bounds = array<i64: 1, 32>}, {transform_indices = @transform_13, window_bounds = array<i64: 1, 8, 32>}]} {
    %c0 = arith.constant 0 : index
    %c0_0 = arith.constant 0 : index
    %c0_1 = arith.constant 0 : index
    %0 = vector.load %arg1[%c0, %c0_0, %c0_1] : memref<1x8x32xf32, #tpu.memory_space<vmem>>, vector<1x8x32xf32>
    %1 = vector.shape_cast %0 : vector<1x8x32xf32> to vector<8x32xf32>
    %c0_2 = arith.constant 0 : index
    %c0_3 = arith.constant 0 : index
    %2 = vector.load %arg2[%c0_2, %c0_3] : memref<1x32xf32, #tpu.memory_space<vmem>>, vector<1x32xf32>
    %c0_4 = arith.constant 0 : index
    %c0_5 = arith.constant 0 : index
    %3 = vector.load %arg3[%c0_4, %c0_5] : memref<1x32xf32, #tpu.memory_space<vmem>>, vector<1x32xf32>
    %c0_6 = arith.constant 0 : index
    %c0_7 = arith.constant 0 : index
    %4 = vector.load %arg8[%c0_6, %c0_7] : memref<1x32xf32, #tpu.memory_space<vmem>>, vector<1x32xf32>
    %c0_8 = arith.constant 0 : index
    %c0_9 = arith.constant 0 : index
    %5 = vector.load %arg9[%c0_8, %c0_9] : memref<1x32xf32, #tpu.memory_space<vmem>>, vector<1x32xf32>
    %c0_10 = arith.constant 0 : index
    %c0_11 = arith.constant 0 : index
    %6 = vector.load %arg5[%c0_10, %c0_11] : memref<1x96xf32, #tpu.memory_space<vmem>>, vector<1x96xf32>
    %c0_12 = arith.constant 0 : index
    %c0_13 = arith.constant 0 : index
    %7 = vector.load %arg7[%c0_12, %c0_13] : memref<1x32xf32, #tpu.memory_space<vmem>>, vector<1x32xf32>
    %c0_14 = arith.constant 0 : index
    %c0_15 = arith.constant 0 : index
    %8 = vector.load %arg11[%c0_14, %c0_15] : memref<1x64xf32, #tpu.memory_space<vmem>>, vector<1x64xf32>
    %c0_16 = arith.constant 0 : index
    %c0_17 = arith.constant 0 : index
    %9 = vector.load %arg13[%c0_16, %c0_17] : memref<1x32xf32, #tpu.memory_space<vmem>>, vector<1x32xf32>
    %cst = arith.constant dense<0.000000e+00> : vector<8xf32>
    %10 = vector.multi_reduction <add>, %1, %cst [1] : vector<8x32xf32> to vector<8xf32>
    %11 = vector.shape_cast %10 : vector<8xf32> to vector<8x1xf32>
    %cst_18 = arith.constant 3.200000e+01 : f32
    %12 = vector.broadcast %cst_18 : f32 to vector<8x1xf32>
    %13 = arith.divf %11, %12 : vector<8x1xf32>
    %14 = vector.broadcast %13 : vector<8x1xf32> to vector<8x32xf32>
    %15 = arith.subf %1, %14 : vector<8x32xf32>
    %16 = arith.mulf %15, %15 : vector<8x32xf32>
    %cst_19 = arith.constant dense<0.000000e+00> : vector<8xf32>
    %17 = vector.multi_reduction <add>, %16, %cst_19 [1] : vector<8x32xf32> to vector<8xf32>
    %18 = vector.shape_cast %17 : vector<8xf32> to vector<8x1xf32>
    %cst_20 = arith.constant 3.200000e+01 : f32
    %19 = vector.broadcast %cst_20 : f32 to vector<8x1xf32>
    %20 = arith.divf %18, %19 : vector<8x1xf32>
    %21 = vector.broadcast %13 : vector<8x1xf32> to vector<8x32xf32>
    %22 = arith.subf %1, %21 : vector<8x32xf32>
    %cst_21 = arith.constant 9.99999974E-6 : f32
    %23 = vector.broadcast %cst_21 : f32 to vector<8x1xf32>
    %24 = arith.addf %20, %23 : vector<8x1xf32>
    %25 = math.rsqrt %24 : vector<8x1xf32>
    %26 = vector.broadcast %25 : vector<8x1xf32> to vector<8x32xf32>
    %27 = arith.mulf %22, %26 : vector<8x32xf32>
    %28 = vector.broadcast %2 : vector<1x32xf32> to vector<8x32xf32>
    %29 = arith.mulf %27, %28 : vector<8x32xf32>
    %30 = vector.broadcast %3 : vector<1x32xf32> to vector<8x32xf32>
    %31 = arith.addf %29, %30 : vector<8x32xf32>
    %c0_22 = arith.constant 0 : index
    %c0_23 = arith.constant 0 : index
    %32 = vector.load %arg4[%c0_22, %c0_23] : memref<32x96xf32, #tpu.memory_space<vmem>>, vector<32x96xf32>
    %cst_24 = arith.constant dense<0.000000e+00> : vector<8x96xf32>
    %33 = tpu.matmul %31, %32, %cst_24 {dimension_numbers = #tpu.dot_dimension_numbers<[1], [0], [0], [1], [0, 0, 1, 1], [], []>} : vector<8x32xf32>, vector<32x96xf32>, vector<8x96xf32> -> vector<8x96xf32>
    %34 = vector.broadcast %6 : vector<1x96xf32> to vector<8x96xf32>
    %35 = arith.addf %33, %34 : vector<8x96xf32>
    %36 = vector.extract_strided_slice %35 {offsets = [0, 0], sizes = [8, 32], strides = [1, 1]} : vector<8x96xf32> to vector<8x32xf32>
    %cst_25 = arith.constant 0.353553385 : f32
    %37 = vector.broadcast %cst_25 : f32 to vector<8x32xf32>
    %38 = arith.mulf %36, %37 : vector<8x32xf32>
    %39 = vector.extract_strided_slice %35 {offsets = [0, 32], sizes = [8, 32], strides = [1, 1]} : vector<8x96xf32> to vector<8x32xf32>
    %40 = vector.extract_strided_slice %35 {offsets = [0, 64], sizes = [8, 32], strides = [1, 1]} : vector<8x96xf32> to vector<8x32xf32>
    %41 = vector.extract_strided_slice %38 {offsets = [0, 0], sizes = [8, 8], strides = [1, 1]} : vector<8x32xf32> to vector<8x8xf32>
    %42 = vector.extract_strided_slice %39 {offsets = [0, 0], sizes = [8, 8], strides = [1, 1]} : vector<8x32xf32> to vector<8x8xf32>
    %43 = vector.extract_strided_slice %40 {offsets = [0, 0], sizes = [8, 8], strides = [1, 1]} : vector<8x32xf32> to vector<8x8xf32>
    %cst_26 = arith.constant dense<0.000000e+00> : vector<8x8xf32>
    %44 = tpu.matmul %41, %42, %cst_26 {dimension_numbers = #tpu.dot_dimension_numbers<[1], [1], [0], [0], [0, 0, 1, 0], [], []>} : vector<8x8xf32>, vector<8x8xf32>, vector<8x8xf32> -> vector<8x8xf32>
    %cst_27 = arith.constant dense<0xFF800000> : vector<8xf32>
    %45 = vector.multi_reduction <maximumf>, %44, %cst_27 [1] : vector<8x8xf32> to vector<8xf32>
    %46 = vector.shape_cast %45 : vector<8xf32> to vector<8x1xf32>
    %47 = vector.broadcast %46 : vector<8x1xf32> to vector<8x8xf32>
    %48 = arith.subf %44, %47 : vector<8x8xf32>
    %49 = math.exp %48 : vector<8x8xf32>
    %cst_28 = arith.constant dense<0.000000e+00> : vector<8xf32>
    %50 = vector.multi_reduction <add>, %49, %cst_28 [1] : vector<8x8xf32> to vector<8xf32>
    %51 = vector.shape_cast %50 : vector<8xf32> to vector<8x1xf32>
    %cst_29 = arith.constant dense<0.000000e+00> : vector<8x8xf32>
    %52 = tpu.matmul %49, %43, %cst_29 {dimension_numbers = #tpu.dot_dimension_numbers<[1], [0], [0], [1], [0, 0, 1, 1], [], []>} : vector<8x8xf32>, vector<8x8xf32>, vector<8x8xf32> -> vector<8x8xf32>
    %53 = tpu.reciprocal %51 : vector<8x1xf32> -> vector<8x1xf32>
    %54 = vector.broadcast %53 : vector<8x1xf32> to vector<8x8xf32>
    %55 = arith.mulf %52, %54 : vector<8x8xf32>
    %56 = vector.extract_strided_slice %38 {offsets = [0, 8], sizes = [8, 8], strides = [1, 1]} : vector<8x32xf32> to vector<8x8xf32>
    %57 = vector.extract_strided_slice %39 {offsets = [0, 8], sizes = [8, 8], strides = [1, 1]} : vector<8x32xf32> to vector<8x8xf32>
    %58 = vector.extract_strided_slice %40 {offsets = [0, 8], sizes = [8, 8], strides = [1, 1]} : vector<8x32xf32> to vector<8x8xf32>
    %cst_30 = arith.constant dense<0.000000e+00> : vector<8x8xf32>
    %59 = tpu.matmul %56, %57, %cst_30 {dimension_numbers = #tpu.dot_dimension_numbers<[1], [1], [0], [0], [0, 0, 1, 0], [], []>} : vector<8x8xf32>, vector<8x8xf32>, vector<8x8xf32> -> vector<8x8xf32>
    %cst_31 = arith.constant dense<0xFF800000> : vector<8xf32>
    %60 = vector.multi_reduction <maximumf>, %59, %cst_31 [1] : vector<8x8xf32> to vector<8xf32>
    %61 = vector.shape_cast %60 : vector<8xf32> to vector<8x1xf32>
    %62 = vector.broadcast %61 : vector<8x1xf32> to vector<8x8xf32>
    %63 = arith.subf %59, %62 : vector<8x8xf32>
    %64 = math.exp %63 : vector<8x8xf32>
    %cst_32 = arith.constant dense<0.000000e+00> : vector<8xf32>
    %65 = vector.multi_reduction <add>, %64, %cst_32 [1] : vector<8x8xf32> to vector<8xf32>
    %66 = vector.shape_cast %65 : vector<8xf32> to vector<8x1xf32>
    %cst_33 = arith.constant dense<0.000000e+00> : vector<8x8xf32>
    %67 = tpu.matmul %64, %58, %cst_33 {dimension_numbers = #tpu.dot_dimension_numbers<[1], [0], [0], [1], [0, 0, 1, 1], [], []>} : vector<8x8xf32>, vector<8x8xf32>, vector<8x8xf32> -> vector<8x8xf32>
    %68 = tpu.reciprocal %66 : vector<8x1xf32> -> vector<8x1xf32>
    %69 = vector.broadcast %68 : vector<8x1xf32> to vector<8x8xf32>
    %70 = arith.mulf %67, %69 : vector<8x8xf32>
    %71 = vector.extract_strided_slice %38 {offsets = [0, 16], sizes = [8, 8], strides = [1, 1]} : vector<8x32xf32> to vector<8x8xf32>
    %72 = vector.extract_strided_slice %39 {offsets = [0, 16], sizes = [8, 8], strides = [1, 1]} : vector<8x32xf32> to vector<8x8xf32>
    %73 = vector.extract_strided_slice %40 {offsets = [0, 16], sizes = [8, 8], strides = [1, 1]} : vector<8x32xf32> to vector<8x8xf32>
    %cst_34 = arith.constant dense<0.000000e+00> : vector<8x8xf32>
    %74 = tpu.matmul %71, %72, %cst_34 {dimension_numbers = #tpu.dot_dimension_numbers<[1], [1], [0], [0], [0, 0, 1, 0], [], []>} : vector<8x8xf32>, vector<8x8xf32>, vector<8x8xf32> -> vector<8x8xf32>
    %cst_35 = arith.constant dense<0xFF800000> : vector<8xf32>
    %75 = vector.multi_reduction <maximumf>, %74, %cst_35 [1] : vector<8x8xf32> to vector<8xf32>
    %76 = vector.shape_cast %75 : vector<8xf32> to vector<8x1xf32>
    %77 = vector.broadcast %76 : vector<8x1xf32> to vector<8x8xf32>
    %78 = arith.subf %74, %77 : vector<8x8xf32>
    %79 = math.exp %78 : vector<8x8xf32>
    %cst_36 = arith.constant dense<0.000000e+00> : vector<8xf32>
    %80 = vector.multi_reduction <add>, %79, %cst_36 [1] : vector<8x8xf32> to vector<8xf32>
    %81 = vector.shape_cast %80 : vector<8xf32> to vector<8x1xf32>
    %cst_37 = arith.constant dense<0.000000e+00> : vector<8x8xf32>
    %82 = tpu.matmul %79, %73, %cst_37 {dimension_numbers = #tpu.dot_dimension_numbers<[1], [0], [0], [1], [0, 0, 1, 1], [], []>} : vector<8x8xf32>, vector<8x8xf32>, vector<8x8xf32> -> vector<8x8xf32>
    %83 = tpu.reciprocal %81 : vector<8x1xf32> -> vector<8x1xf32>
    %84 = vector.broadcast %83 : vector<8x1xf32> to vector<8x8xf32>
    %85 = arith.mulf %82, %84 : vector<8x8xf32>
    %86 = vector.extract_strided_slice %38 {offsets = [0, 24], sizes = [8, 8], strides = [1, 1]} : vector<8x32xf32> to vector<8x8xf32>
    %87 = vector.extract_strided_slice %39 {offsets = [0, 24], sizes = [8, 8], strides = [1, 1]} : vector<8x32xf32> to vector<8x8xf32>
    %88 = vector.extract_strided_slice %40 {offsets = [0, 24], sizes = [8, 8], strides = [1, 1]} : vector<8x32xf32> to vector<8x8xf32>
    %cst_38 = arith.constant dense<0.000000e+00> : vector<8x8xf32>
    %89 = tpu.matmul %86, %87, %cst_38 {dimension_numbers = #tpu.dot_dimension_numbers<[1], [1], [0], [0], [0, 0, 1, 0], [], []>} : vector<8x8xf32>, vector<8x8xf32>, vector<8x8xf32> -> vector<8x8xf32>
    %cst_39 = arith.constant dense<0xFF800000> : vector<8xf32>
    %90 = vector.multi_reduction <maximumf>, %89, %cst_39 [1] : vector<8x8xf32> to vector<8xf32>
    %91 = vector.shape_cast %90 : vector<8xf32> to vector<8x1xf32>
    %92 = vector.broadcast %91 : vector<8x1xf32> to vector<8x8xf32>
    %93 = arith.subf %89, %92 : vector<8x8xf32>
    %94 = math.exp %93 : vector<8x8xf32>
    %cst_40 = arith.constant dense<0.000000e+00> : vector<8xf32>
    %95 = vector.multi_reduction <add>, %94, %cst_40 [1] : vector<8x8xf32> to vector<8xf32>
    %96 = vector.shape_cast %95 : vector<8xf32> to vector<8x1xf32>
    %cst_41 = arith.constant dense<0.000000e+00> : vector<8x8xf32>
    %97 = tpu.matmul %94, %88, %cst_41 {dimension_numbers = #tpu.dot_dimension_numbers<[1], [0], [0], [1], [0, 0, 1, 1], [], []>} : vector<8x8xf32>, vector<8x8xf32>, vector<8x8xf32> -> vector<8x8xf32>
    %98 = tpu.reciprocal %96 : vector<8x1xf32> -> vector<8x1xf32>
    %99 = vector.broadcast %98 : vector<8x1xf32> to vector<8x8xf32>
    %100 = arith.mulf %97, %99 : vector<8x8xf32>
    %101 = tpu.concatenate %55, %70, %85, %100 in 1 : vector<8x8xf32>, vector<8x8xf32>, vector<8x8xf32>, vector<8x8xf32> -> vector<8x32xf32>
    %c0_42 = arith.constant 0 : index
    %c0_43 = arith.constant 0 : index
    %102 = vector.load %arg6[%c0_42, %c0_43] : memref<32x32xf32, #tpu.memory_space<vmem>>, vector<32x32xf32>
    %cst_44 = arith.constant dense<0.000000e+00> : vector<8x32xf32>
    %103 = tpu.matmul %101, %102, %cst_44 {dimension_numbers = #tpu.dot_dimension_numbers<[1], [0], [0], [1], [0, 0, 1, 1], [], []>} : vector<8x32xf32>, vector<32x32xf32>, vector<8x32xf32> -> vector<8x32xf32>
    %104 = vector.broadcast %7 : vector<1x32xf32> to vector<8x32xf32>
    %105 = arith.addf %103, %104 : vector<8x32xf32>
    %106 = arith.addf %1, %105 : vector<8x32xf32>
    %cst_45 = arith.constant dense<0.000000e+00> : vector<8xf32>
    %107 = vector.multi_reduction <add>, %106, %cst_45 [1] : vector<8x32xf32> to vector<8xf32>
    %108 = vector.shape_cast %107 : vector<8xf32> to vector<8x1xf32>
    %cst_46 = arith.constant 3.200000e+01 : f32
    %109 = vector.broadcast %cst_46 : f32 to vector<8x1xf32>
    %110 = arith.divf %108, %109 : vector<8x1xf32>
    %111 = vector.broadcast %110 : vector<8x1xf32> to vector<8x32xf32>
    %112 = arith.subf %106, %111 : vector<8x32xf32>
    %113 = arith.mulf %112, %112 : vector<8x32xf32>
    %cst_47 = arith.constant dense<0.000000e+00> : vector<8xf32>
    %114 = vector.multi_reduction <add>, %113, %cst_47 [1] : vector<8x32xf32> to vector<8xf32>
    %115 = vector.shape_cast %114 : vector<8xf32> to vector<8x1xf32>
    %cst_48 = arith.constant 3.200000e+01 : f32
    %116 = vector.broadcast %cst_48 : f32 to vector<8x1xf32>
    %117 = arith.divf %115, %116 : vector<8x1xf32>
    %118 = vector.broadcast %110 : vector<8x1xf32> to vector<8x32xf32>
    %119 = arith.subf %106, %118 : vector<8x32xf32>
    %cst_49 = arith.constant 9.99999974E-6 : f32
    %120 = vector.broadcast %cst_49 : f32 to vector<8x1xf32>
    %121 = arith.addf %117, %120 : vector<8x1xf32>
    %122 = math.rsqrt %121 : vector<8x1xf32>
    %123 = vector.broadcast %122 : vector<8x1xf32> to vector<8x32xf32>
    %124 = arith.mulf %119, %123 : vector<8x32xf32>
    %125 = vector.broadcast %4 : vector<1x32xf32> to vector<8x32xf32>
    %126 = arith.mulf %124, %125 : vector<8x32xf32>
    %127 = vector.broadcast %5 : vector<1x32xf32> to vector<8x32xf32>
    %128 = arith.addf %126, %127 : vector<8x32xf32>
    %c0_50 = arith.constant 0 : index
    %c0_51 = arith.constant 0 : index
    %129 = vector.load %arg10[%c0_50, %c0_51] : memref<32x64xf32, #tpu.memory_space<vmem>>, vector<32x64xf32>
    %cst_52 = arith.constant dense<0.000000e+00> : vector<8x64xf32>
    %130 = tpu.matmul %128, %129, %cst_52 {dimension_numbers = #tpu.dot_dimension_numbers<[1], [0], [0], [1], [0, 0, 1, 1], [], []>} : vector<8x32xf32>, vector<32x64xf32>, vector<8x64xf32> -> vector<8x64xf32>
    %131 = vector.broadcast %8 : vector<1x64xf32> to vector<8x64xf32>
    %132 = arith.addf %130, %131 : vector<8x64xf32>
    %cst_53 = arith.constant 5.000000e-01 : f32
    %133 = vector.broadcast %cst_53 : f32 to vector<8x64xf32>
    %134 = arith.mulf %133, %132 : vector<8x64xf32>
    %cst_54 = arith.constant 0.707106769 : f32
    %135 = vector.broadcast %cst_54 : f32 to vector<8x64xf32>
    %136 = arith.mulf %132, %135 : vector<8x64xf32>
    %137 = math.erf %136 : vector<8x64xf32>
    %cst_55 = arith.constant 1.000000e+00 : f32
    %138 = vector.broadcast %cst_55 : f32 to vector<8x64xf32>
    %139 = arith.addf %138, %137 : vector<8x64xf32>
    %140 = arith.mulf %134, %139 : vector<8x64xf32>
    %c0_56 = arith.constant 0 : index
    %c0_57 = arith.constant 0 : index
    %141 = vector.load %arg12[%c0_56, %c0_57] : memref<64x32xf32, #tpu.memory_space<vmem>>, vector<64x32xf32>
    %cst_58 = arith.constant dense<0.000000e+00> : vector<8x32xf32>
    %142 = tpu.matmul %140, %141, %cst_58 {dimension_numbers = #tpu.dot_dimension_numbers<[1], [0], [0], [1], [0, 0, 1, 1], [], []>} : vector<8x64xf32>, vector<64x32xf32>, vector<8x32xf32> -> vector<8x32xf32>
    %143 = vector.broadcast %9 : vector<1x32xf32> to vector<8x32xf32>
    %144 = arith.addf %142, %143 : vector<8x32xf32>
    %145 = arith.addf %106, %144 : vector<8x32xf32>
    %c0_59 = arith.constant 0 : index
    %c0_60 = arith.constant 0 : index
    %c0_61 = arith.constant 0 : index
    %146 = vector.load %arg14[%c0_59, %c0_60, %c0_61] : memref<1x8x32xf32, #tpu.memory_space<vmem>>, vector<1x8x32xf32>
    %147 = vector.shape_cast %146 : vector<1x8x32xf32> to vector<8x32xf32>
    %148 = vector.shape_cast %145 : vector<8x32xf32> to vector<1x8x32xf32>
    tpu.vector_store %arg14[%c0_59, %c0_60, %c0_61], %148 {strides = array<i32>} : memref<1x8x32xf32, #tpu.memory_space<vmem>>, vector<1x8x32xf32>,
    return
  }
  func.func @transform_0(%arg0: i32) -> (i32, i32, i32) {
    %c0_i32 = arith.constant 0 : i32
    %c0_i32_0 = arith.constant 0 : i32
    %c0_i32_1 = arith.constant 0 : i32
    return %arg0, %c0_i32, %c0_i32_0 : i32, i32, i32
  }
  func.func @transform_1(%arg0: i32) -> (i32, i32) {
    %c0_i32 = arith.constant 0 : i32
    %c0_i32_0 = arith.constant 0 : i32
    %c0_i32_1 = arith.constant 0 : i32
    return %c0_i32, %c0_i32_0 : i32, i32
  }
  func.func @transform_2(%arg0: i32) -> (i32, i32) {
    %c0_i32 = arith.constant 0 : i32
    %c0_i32_0 = arith.constant 0 : i32
    %c0_i32_1 = arith.constant 0 : i32
    return %c0_i32, %c0_i32_0 : i32, i32
  }
  func.func @transform_3(%arg0: i32) -> (i32, i32) {
    %c0_i32 = arith.constant 0 : i32
    %c0_i32_0 = arith.constant 0 : i32
    %c0_i32_1 = arith.constant 0 : i32
    return %c0_i32, %c0_i32_0 : i32, i32
  }
  func.func @transform_4(%arg0: i32) -> (i32, i32) {
    %c0_i32 = arith.constant 0 : i32
    %c0_i32_0 = arith.constant 0 : i32
    %c0_i32_1 = arith.constant 0 : i32
    return %c0_i32, %c0_i32_0 : i32, i32
  }
  func.func @transform_5(%arg0: i32) -> (i32, i32) {
    %c0_i32 = arith.constant 0 : i32
    %c0_i32_0 = arith.constant 0 : i32
    %c0_i32_1 = arith.constant 0 : i32
    return %c0_i32, %c0_i32_0 : i32, i32
  }
  func.func @transform_6(%arg0: i32) -> (i32, i32) {
    %c0_i32 = arith.constant 0 : i32
    %c0_i32_0 = arith.constant 0 : i32
    %c0_i32_1 = arith.constant 0 : i32
    return %c0_i32, %c0_i32_0 : i32, i32
  }
  func.func @transform_7(%arg0: i32) -> (i32, i32) {
    %c0_i32 = arith.constant 0 : i32
    %c0_i32_0 = arith.constant 0 : i32
    %c0_i32_1 = arith.constant 0 : i32
    return %c0_i32, %c0_i32_0 : i32, i32
  }
  func.func @transform_8(%arg0: i32) -> (i32, i32) {
    %c0_i32 = arith.constant 0 : i32
    %c0_i32_0 = arith.constant 0 : i32
    %c0_i32_1 = arith.constant 0 : i32
    return %c0_i32, %c0_i32_0 : i32, i32
  }
  func.func @transform_9(%arg0: i32) -> (i32, i32) {
    %c0_i32 = arith.constant 0 : i32
    %c0_i32_0 = arith.constant 0 : i32
    %c0_i32_1 = arith.constant 0 : i32
    return %c0_i32, %c0_i32_0 : i32, i32
  }
  func.func @transform_10(%arg0: i32) -> (i32, i32) {
    %c0_i32 = arith.constant 0 : i32
    %c0_i32_0 = arith.constant 0 : i32
    %c0_i32_1 = arith.constant 0 : i32
    return %c0_i32, %c0_i32_0 : i32, i32
  }
  func.func @transform_11(%arg0: i32) -> (i32, i32) {
    %c0_i32 = arith.constant 0 : i32
    %c0_i32_0 = arith.constant 0 : i32
    %c0_i32_1 = arith.constant 0 : i32
    return %c0_i32, %c0_i32_0 : i32, i32
  }
  func.func @transform_12(%arg0: i32) -> (i32, i32) {
    %c0_i32 = arith.constant 0 : i32
    %c0_i32_0 = arith.constant 0 : i32
    %c0_i32_1 = arith.constant 0 : i32
    return %c0_i32, %c0_i32_0 : i32, i32
  }
  func.func @transform_13(%arg0: i32) -> (i32, i32, i32) {
    %c0_i32 = arith.constant 0 : i32
    %c0_i32_0 = arith.constant 0 : i32
    %c0_i32_1 = arith.constant 0 : i32
    return %arg0, %c0_i32, %c0_i32_0 : i32, i32, i32
  }
}

</mosaic_0001>

<llo_original>
// kernel: tpu_custom_call.1
$region0: #{tpu_custom_call.1}
  #allocation0 [shape = 'u32[]', space=smem, size = 0x4, offset = 0x4, fixed_abs, tag = 'smem constant byte address 0x4 - core index']
  #allocation1 [shape = 'u32[144,128]{1,0:T(1,128)}', space=vmem, size = 0x12000, scoped, tag = 'internal scratch']
  %s0 = inlined_call_operand.hbm [shape: f32[2,8,32], index: 0, kind: input, shape index: {}]
  %s1 = inlined_call_operand.vmem [shape: f32[1,32], index: 1, kind: input, shape index: {}]
  %s2 = inlined_call_operand.vmem [shape: f32[1,32], index: 2, kind: input, shape index: {}]
  %s3 = inlined_call_operand.vmem [shape: f32[32,96], index: 3, kind: input, shape index: {}]
  %s4 = inlined_call_operand.vmem [shape: f32[1,96], index: 4, kind: input, shape index: {}]
  %s5 = inlined_call_operand.vmem [shape: f32[32,32], index: 5, kind: input, shape index: {}]
  %s6 = inlined_call_operand.vmem [shape: f32[1,32], index: 6, kind: input, shape index: {}]
  %s7 = inlined_call_operand.vmem [shape: f32[1,32], index: 7, kind: input, shape index: {}]
  %s8 = inlined_call_operand.vmem [shape: f32[1,32], index: 8, kind: input, shape index: {}]
  %s9 = inlined_call_operand.vmem [shape: f32[32,64], index: 9, kind: input, shape index: {}]
  %s10 = inlined_call_operand.vmem [shape: f32[1,64], index: 10, kind: input, shape index: {}]
  %s11 = inlined_call_operand.vmem [shape: f32[64,32], index: 11, kind: input, shape index: {}]
  %s12 = inlined_call_operand.vmem [shape: f32[1,32], index: 12, kind: input, shape index: {}]
  %s13 = inlined_call_operand.hbm [shape: f32[2,8,32], index: 13, kind: output, shape index: {}]
  %s14 = sld [smem:[#allocation0]]
  $region89: #{tpu_custom_call.1} parent=0
    _
  %s16 = ssub.s32 1, %s14
  %s17 = scalar_select 0, %s16, %s14
  $region1: #{tpu_custom_call.1} parent=0
    #allocation2 [shape = 'u8[8192]{0}', space=vmem, size = 0x2000, scoped, tag = 'input window, operand 0']
    #allocation3 [shape = 's32[2]{0}', space=sflag, size = 0x8, scoped, tag = 'scoped memory for tpu_custom_call.1']
    #allocation4 [shape = 's32[2]{0}', space=sflag, size = 0x8, scoped, tag = 'scoped memory for tpu_custom_call.1']
    #allocation5 [shape = 'u8[8192]{0}', space=vmem, size = 0x2000, scoped, tag = 'output window, operand 0']
    %18 = vsyncpa [#allocation3], 0
    %s19 = scalar_lea.sflag [#allocation3], 1
    %20 = vsyncpa %s19, 0
    %21 = vsyncpa [#allocation4], 0
    %s22 = scalar_lea.sflag [#allocation4], 1
    %23 = vsyncpa %s22, 0
    loop: start=0, step=1, limit=4
    $region2: #{tpu_custom_call.1} parent=1 // loop_pre_header
      _
    $region3: #{tpu_custom_call.1} parent=1 // loop_header
      %s25 = sphi 0, %s29
      %p26 = scmp.ge.s32.totalorder %s25, 4
      %s35 = sphi 0, %s37
      %s38 = sphi 0, %s35
      %s39 = sphi 0, %s38
      %s55 = sphi 0, %s39
      %s59 = sphi 0, %s59
      %s61 = sphi 0, %s59
      %s62 = sphi 0, %s61
      %s76 = sphi 0, %s62
      %s80 = sphi 0, %s80
      %s82 = sphi 0, %s80
      %s83 = sphi 0, %s82
      %s97 = sphi 0, %s83
      %s101 = sphi 0, %s101
      %s103 = sphi 0, %s101
      %s104 = sphi 0, %s103
      %s118 = sphi 0, %s104
      %s122 = sphi 0, %s122
      %s124 = sphi 0, %s122
      %s125 = sphi 0, %s124
      %s139 = sphi 0, %s125
      %s143 = sphi 0, %s143
      %s145 = sphi 0, %s143
      %s146 = sphi 0, %s145
      %s160 = sphi 0, %s146
      %s164 = sphi 0, %s164
      %s166 = sphi 0, %s164
      %s167 = sphi 0, %s166
      %s181 = sphi 0, %s167
      %s185 = sphi 0, %s185
      %s187 = sphi 0, %s185
      %s188 = sphi 0, %s187
      %s202 = sphi 0, %s188
      %s206 = sphi 0, %s206
      %s208 = sphi 0, %s206
      %s209 = sphi 0, %s208
      %s223 = sphi 0, %s209
      %s227 = sphi 0, %s227
      %s229 = sphi 0, %s227
      %s230 = sphi 0, %s229
      %s244 = sphi 0, %s230
      %s248 = sphi 0, %s248
      %s250 = sphi 0, %s248
      %s251 = sphi 0, %s250
      %s265 = sphi 0, %s251
      %s269 = sphi 0, %s269
      %s271 = sphi 0, %s269
      %s272 = sphi 0, %s271
      %s286 = sphi 0, %s272
      %s290 = sphi 0, %s290
      %s292 = sphi 0, %s290
      %s293 = sphi 0, %s292
      %s307 = sphi 0, %s293
      %s313 = sphi 0, %s315
      %s316 = sphi 0, %s313
      %s317 = sphi 0, %s316
      %s333 = sphi 0, %s317
    $region4: #{tpu_custom_call.1} parent=1 // loop_header_branch
      %28 = sbr.rel (%p26) target = $region8
    $region5: #{tpu_custom_call.1} parent=1 // loop_body
      %s30 = ssub.s32 %s25, 1
      %s31 = ssub.s32 %s25, 2
      %s32 = sadd.s32 %s25, 1
      %s33 = ssub.s32 %s25, %s32
      %p34 = scmp.eq.s32.totalorder %s33, 0
      %s36 = sadd.s32 %s35, 1
      %s37 = scalar_select %p34, %s35, %s36
      %p40 = pneg %p34
      %p41 = scmp.eq.s32.totalorder %s25, 1
      %p42 = por %p40, %p41
      %p43 = scmp.ne.s32.totalorder %s35, %s38
      %p44 = scmp.eq.s32.totalorder %s25, 0
      %p45 = por %p43, %p44
      %p46 = scmp.ne.s32.totalorder %s35, %s38
      %p47 = scmp.eq.s32.totalorder %s30, 1
      %p48 = por %p46, %p47
      %p49 = scmp.ne.s32.totalorder %s38, %s39
      %p50 = scmp.eq.s32.totalorder %s30, 0
      %p51 = por %p49, %p50
      %p52 = scmp.ne.s32.totalorder %s38, %s39
      %p53 = scmp.eq.s32.totalorder %s31, 1
      %p54 = por %p52, %p53
      %p56 = scmp.ne.s32.totalorder %s39, %s55
      %p57 = scmp.eq.s32.totalorder %s31, 0
      %p58 = por %p56, %p57
      %s60 = sadd.s32 %s59, 1
      %p63 = scmp.eq.s32.totalorder %s25, 1
      %p64 = scmp.ne.s32.totalorder %s59, %s61
      %p65 = scmp.eq.s32.totalorder %s25, 0
      %p66 = por %p64, %p65
      %p67 = scmp.ne.s32.totalorder %s59, %s61
      %p68 = scmp.eq.s32.totalorder %s30, 1
      %p69 = por %p67, %p68
      %p70 = scmp.ne.s32.totalorder %s61, %s62
      %p71 = scmp.eq.s32.totalorder %s30, 0
      %p72 = por %p70, %p71
      %p73 = scmp.ne.s32.totalorder %s61, %s62
      %p74 = scmp.eq.s32.totalorder %s31, 1
      %p75 = por %p73, %p74
      %p77 = scmp.ne.s32.totalorder %s62, %s76
      %p78 = scmp.eq.s32.totalorder %s31, 0
      %p79 = por %p77, %p78
      %s81 = sadd.s32 %s80, 1
      %p84 = scmp.eq.s32.totalorder %s25, 1
      %p85 = scmp.ne.s32.totalorder %s80, %s82
      %p86 = scmp.eq.s32.totalorder %s25, 0
      %p87 = por %p85, %p86
      %p88 = scmp.ne.s32.totalorder %s80, %s82
      %p89 = scmp.eq.s32.totalorder %s30, 1
      %p90 = por %p88, %p89
      %p91 = scmp.ne.s32.totalorder %s82, %s83
      %p92 = scmp.eq.s32.totalorder %s30, 0
      %p93 = por %p91, %p92
      %p94 = scmp.ne.s32.totalorder %s82, %s83
      %p95 = scmp.eq.s32.totalorder %s31, 1
      %p96 = por %p94, %p95
      %p98 = scmp.ne.s32.totalorder %s83, %s97
      %p99 = scmp.eq.s32.totalorder %s31, 0
      %p100 = por %p98, %p99
      %s102 = sadd.s32 %s101, 1
      %p105 = scmp.eq.s32.totalorder %s25, 1
      %p106 = scmp.ne.s32.totalorder %s101, %s103
      %p107 = scmp.eq.s32.totalorder %s25, 0
      %p108 = por %p106, %p107
      %p109 = scmp.ne.s32.totalorder %s101, %s103
      %p110 = scmp.eq.s32.totalorder %s30, 1
      %p111 = por %p109, %p110
      %p112 = scmp.ne.s32.totalorder %s103, %s104
      %p113 = scmp.eq.s32.totalorder %s30, 0
      %p114 = por %p112, %p113
      %p115 = scmp.ne.s32.totalorder %s103, %s104
      %p116 = scmp.eq.s32.totalorder %s31, 1
      %p117 = por %p115, %p116
      %p119 = scmp.ne.s32.totalorder %s104, %s118
      %p120 = scmp.eq.s32.totalorder %s31, 0
      %p121 = por %p119, %p120
      %s123 = sadd.s32 %s122, 1
      %p126 = scmp.eq.s32.totalorder %s25, 1
      %p127 = scmp.ne.s32.totalorder %s122, %s124
      %p128 = scmp.eq.s32.totalorder %s25, 0
      %p129 = por %p127, %p128
      %p130 = scmp.ne.s32.totalorder %s122, %s124
      %p131 = scmp.eq.s32.totalorder %s30, 1
      %p132 = por %p130, %p131
      %p133 = scmp.ne.s32.totalorder %s124, %s125
      %p134 = scmp.eq.s32.totalorder %s30, 0
      %p135 = por %p133, %p134
      %p136 = scmp.ne.s32.totalorder %s124, %s125
      %p137 = scmp.eq.s32.totalorder %s31, 1
      %p138 = por %p136, %p137
      %p140 = scmp.ne.s32.totalorder %s125, %s139
      %p141 = scmp.eq.s32.totalorder %s31, 0
      %p142 = por %p140, %p141
      %s144 = sadd.s32 %s143, 1
      %p147 = scmp.eq.s32.totalorder %s25, 1
      %p148 = scmp.ne.s32.totalorder %s143, %s145
      %p149 = scmp.eq.s32.totalorder %s25, 0
      %p150 = por %p148, %p149
      %p151 = scmp.ne.s32.totalorder %s143, %s145
      %p152 = scmp.eq.s32.totalorder %s30, 1
      %p153 = por %p151, %p152
      %p154 = scmp.ne.s32.totalorder %s145, %s146
      %p155 = scmp.eq.s32.totalorder %s30, 0
      %p156 = por %p154, %p155
      %p157 = scmp.ne.s32.totalorder %s145, %s146
      %p158 = scmp.eq.s32.totalorder %s31, 1
      %p159 = por %p157, %p158
      %p161 = scmp.ne.s32.totalorder %s146, %s160
      %p162 = scmp.eq.s32.totalorder %s31, 0
      %p163 = por %p161, %p162
      %s165 = sadd.s32 %s164, 1
      %p168 = scmp.eq.s32.totalorder %s25, 1
      %p169 = scmp.ne.s32.totalorder %s164, %s166
      %p170 = scmp.eq.s32.totalorder %s25, 0
      %p171 = por %p169, %p170
      %p172 = scmp.ne.s32.totalorder %s164, %s166
      %p173 = scmp.eq.s32.totalorder %s30, 1
      %p174 = por %p172, %p173
      %p175 = scmp.ne.s32.totalorder %s166, %s167
      %p176 = scmp.eq.s32.totalorder %s30, 0
      %p177 = por %p175, %p176
      %p178 = scmp.ne.s32.totalorder %s166, %s167
      %p179 = scmp.eq.s32.totalorder %s31, 1
      %p180 = por %p178, %p179
      %p182 = scmp.ne.s32.totalorder %s167, %s181
      %p183 = scmp.eq.s32.totalorder %s31, 0
      %p184 = por %p182, %p183
      %s186 = sadd.s32 %s185, 1
      %p189 = scmp.eq.s32.totalorder %s25, 1
      %p190 = scmp.ne.s32.totalorder %s185, %s187
      %p191 = scmp.eq.s32.totalorder %s25, 0
      %p192 = por %p190, %p191
      %p193 = scmp.ne.s32.totalorder %s185, %s187
      %p194 = scmp.eq.s32.totalorder %s30, 1
      %p195 = por %p193, %p194
      %p196 = scmp.ne.s32.totalorder %s187, %s188
      %p197 = scmp.eq.s32.totalorder %s30, 0
      %p198 = por %p196, %p197
      %p199 = scmp.ne.s32.totalorder %s187, %s188
      %p200 = scmp.eq.s32.totalorder %s31, 1
      %p201 = por %p199, %p200
      %p203 = scmp.ne.s32.totalorder %s188, %s202
      %p204 = scmp.eq.s32.totalorder %s31, 0
      %p205 = por %p203, %p204
      %s207 = sadd.s32 %s206, 1
      %p210 = scmp.eq.s32.totalorder %s25, 1
      %p211 = scmp.ne.s32.totalorder %s206, %s208
      %p212 = scmp.eq.s32.totalorder %s25, 0
      %p213 = por %p211, %p212
      %p214 = scmp.ne.s32.totalorder %s206, %s208
      %p215 = scmp.eq.s32.totalorder %s30, 1
      %p216 = por %p214, %p215
      %p217 = scmp.ne.s32.totalorder %s208, %s209
      %p218 = scmp.eq.s32.totalorder %s30, 0
      %p219 = por %p217, %p218
      %p220 = scmp.ne.s32.totalorder %s208, %s209
      %p221 = scmp.eq.s32.totalorder %s31, 1
      %p222 = por %p220, %p221
      %p224 = scmp.ne.s32.totalorder %s209, %s223
      %p225 = scmp.eq.s32.totalorder %s31, 0
      %p226 = por %p224, %p225
      %s228 = sadd.s32 %s227, 1
      %p231 = scmp.eq.s32.totalorder %s25, 1
      %p232 = scmp.ne.s32.totalorder %s227, %s229
      %p233 = scmp.eq.s32.totalorder %s25, 0
      %p234 = por %p232, %p233
      %p235 = scmp.ne.s32.totalorder %s227, %s229
      %p236 = scmp.eq.s32.totalorder %s30, 1
      %p237 = por %p235, %p236
      %p238 = scmp.ne.s32.totalorder %s229, %s230
      %p239 = scmp.eq.s32.totalorder %s30, 0
      %p240 = por %p238, %p239
      %p241 = scmp.ne.s32.totalorder %s229, %s230
      %p242 = scmp.eq.s32.totalorder %s31, 1
      %p243 = por %p241, %p242
      %p245 = scmp.ne.s32.totalorder %s230, %s244
      %p246 = scmp.eq.s32.totalorder %s31, 0
      %p247 = por %p245, %p246
      %s249 = sadd.s32 %s248, 1
      %p252 = scmp.eq.s32.totalorder %s25, 1
      %p253 = scmp.ne.s32.totalorder %s248, %s250
      %p254 = scmp.eq.s32.totalorder %s25, 0
      %p255 = por %p253, %p254
      %p256 = scmp.ne.s32.totalorder %s248, %s250
      %p257 = scmp.eq.s32.totalorder %s30, 1
      %p258 = por %p256, %p257
      %p259 = scmp.ne.s32.totalorder %s250, %s251
      %p260 = scmp.eq.s32.totalorder %s30, 0
      %p261 = por %p259, %p260
      %p262 = scmp.ne.s32.totalorder %s250, %s251
      %p263 = scmp.eq.s32.totalorder %s31, 1
      %p264 = por %p262, %p263
      %p266 = scmp.ne.s32.totalorder %s251, %s265
      %p267 = scmp.eq.s32.totalorder %s31, 0
      %p268 = por %p266, %p267
      %s270 = sadd.s32 %s269, 1
      %p273 = scmp.eq.s32.totalorder %s25, 1
      %p274 = scmp.ne.s32.totalorder %s269, %s271
      %p275 = scmp.eq.s32.totalorder %s25, 0
      %p276 = por %p274, %p275
      %p277 = scmp.ne.s32.totalorder %s269, %s271
      %p278 = scmp.eq.s32.totalorder %s30, 1
      %p279 = por %p277, %p278
      %p280 = scmp.ne.s32.totalorder %s271, %s272
      %p281 = scmp.eq.s32.totalorder %s30, 0
      %p282 = por %p280, %p281
      %p283 = scmp.ne.s32.totalorder %s271, %s272
      %p284 = scmp.eq.s32.totalorder %s31, 1
      %p285 = por %p283, %p284
      %p287 = scmp.ne.s32.totalorder %s272, %s286
      %p288 = scmp.eq.s32.totalorder %s31, 0
      %p289 = por %p287, %p288
      %s291 = sadd.s32 %s290, 1
      %p294 = scmp.eq.s32.totalorder %s25, 1
      %p295 = scmp.ne.s32.totalorder %s290, %s292
      %p296 = scmp.eq.s32.totalorder %s25, 0
      %p297 = por %p295, %p296
      %p298 = scmp.ne.s32.totalorder %s290, %s292
      %p299 = scmp.eq.s32.totalorder %s30, 1
      %p300 = por %p298, %p299
      %p301 = scmp.ne.s32.totalorder %s292, %s293
      %p302 = scmp.eq.s32.totalorder %s30, 0
      %p303 = por %p301, %p302
      %p304 = scmp.ne.s32.totalorder %s292, %s293
      %p305 = scmp.eq.s32.totalorder %s31, 1
      %p306 = por %p304, %p305
      %p308 = scmp.ne.s32.totalorder %s293, %s307
      %p309 = scmp.eq.s32.totalorder %s31, 0
      %p310 = por %p308, %p309
      %s311 = ssub.s32 %s25, %s32
      %p312 = scmp.eq.s32.totalorder %s311, 0
      %s314 = sadd.s32 %s313, 1
      %s315 = scalar_select %p312, %s313, %s314
      %p318 = pneg %p312
      %p319 = scmp.eq.s32.totalorder %s25, 1
      %p320 = por %p318, %p319
      %p321 = scmp.ne.s32.totalorder %s313, %s316
      %p322 = scmp.eq.s32.totalorder %s25, 0
      %p323 = por %p321, %p322
      %p324 = scmp.ne.s32.totalorder %s313, %s316
      %p325 = scmp.eq.s32.totalorder %s30, 1
      %p326 = por %p324, %p325
      %p327 = scmp.ne.s32.totalorder %s316, %s317
      %p328 = scmp.eq.s32.totalorder %s30, 0
      %p329 = por %p327, %p328
      %p330 = scmp.ne.s32.totalorder %s316, %s317
      %p331 = scmp.eq.s32.totalorder %s31, 1
      %p332 = por %p330, %p331
      %p334 = scmp.ne.s32.totalorder %s317, %s333
      %p335 = scmp.eq.s32.totalorder %s31, 0
      %p336 = por %p334, %p335
      %p337 = scmp.le.s32.totalorder 1, %s25
      %p338 = scmp.lt.s32.totalorder %s25, 3
      %p339 = pnand %p337, %p338
      %p340 = pneg %p339
      // Predicated region
      $region9: #{tpu_custom_call.1} parent=5 // pred_check
        _
      $region10: #{tpu_custom_call.1} parent=5 // pred_check_branch
        %342 = sbr.rel (%p339) target = $region12
      $region11: #{tpu_custom_call.1} parent=5 // pred_region
        %s343 = ssub.s32 %s25, 1
        // Predicated region
        $region13: #{tpu_custom_call.1} parent=11 // pred_check
          %p344 = pneg %p72
        $region14: #{tpu_custom_call.1} parent=11 // pred_check_branch
          %346 = sbr.rel (%p344) target = $region16
        $region15: #{tpu_custom_call.1} parent=11 // pred_region
          _
        $region16: #{tpu_custom_call.1} parent=11 // pred_fallthru
          _
        // Predicated region
        $region17: #{tpu_custom_call.1} parent=11 // pred_check
          %p347 = pneg %p93
        $region18: #{tpu_custom_call.1} parent=11 // pred_check_branch
          %349 = sbr.rel (%p347) target = $region20
        $region19: #{tpu_custom_call.1} parent=11 // pred_region
          _
        $region20: #{tpu_custom_call.1} parent=11 // pred_fallthru
          _
        // Predicated region
        $region21: #{tpu_custom_call.1} parent=11 // pred_check
          %p350 = pneg %p114
        $region22: #{tpu_custom_call.1} parent=11 // pred_check_branch
          %352 = sbr.rel (%p350) target = $region24
        $region23: #{tpu_custom_call.1} parent=11 // pred_region
          _
        $region24: #{tpu_custom_call.1} parent=11 // pred_fallthru
          _
        // Predicated region
        $region25: #{tpu_custom_call.1} parent=11 // pred_check
          %p353 = pneg %p135
        $region26: #{tpu_custom_call.1} parent=11 // pred_check_branch
          %355 = sbr.rel (%p353) target = $region28
        $region27: #{tpu_custom_call.1} parent=11 // pred_region
          _
        $region28: #{tpu_custom_call.1} parent=11 // pred_fallthru
          _
        // Predicated region
        $region29: #{tpu_custom_call.1} parent=11 // pred_check
          %p356 = pneg %p156
        $region30: #{tpu_custom_call.1} parent=11 // pred_check_branch
          %358 = sbr.rel (%p356) target = $region32
        $region31: #{tpu_custom_call.1} parent=11 // pred_region
          _
        $region32: #{tpu_custom_call.1} parent=11 // pred_fallthru
          _
        // Predicated region
        $region33: #{tpu_custom_call.1} parent=11 // pred_check
          %p359 = pneg %p177
        $region34: #{tpu_custom_call.1} parent=11 // pred_check_branch
          %361 = sbr.rel (%p359) target = $region36
        $region35: #{tpu_custom_call.1} parent=11 // pred_region
          _
        $region36: #{tpu_custom_call.1} parent=11 // pred_fallthru
          _
        // Predicated region
        $region37: #{tpu_custom_call.1} parent=11 // pred_check
          %p362 = pneg %p198
        $region38: #{tpu_custom_call.1} parent=11 // pred_check_branch
          %364 = sbr.rel (%p362) target = $region40
        $region39: #{tpu_custom_call.1} parent=11 // pred_region
          _
        $region40: #{tpu_custom_call.1} parent=11 // pred_fallthru
          _
        // Predicated region
        $region41: #{tpu_custom_call.1} parent=11 // pred_check
          %p365 = pneg %p219
        $region42: #{tpu_custom_call.1} parent=11 // pred_check_branch
          %367 = sbr.rel (%p365) target = $region44
        $region43: #{tpu_custom_call.1} parent=11 // pred_region
          _
        $region44: #{tpu_custom_call.1} parent=11 // pred_fallthru
          _
        // Predicated region
        $region45: #{tpu_custom_call.1} parent=11 // pred_check
          %p368 = pneg %p240
        $region46: #{tpu_custom_call.1} parent=11 // pred_check_branch
          %370 = sbr.rel (%p368) target = $region48
        $region47: #{tpu_custom_call.1} parent=11 // pred_region
          _
        $region48: #{tpu_custom_call.1} parent=11 // pred_fallthru
          _
        // Predicated region
        $region49: #{tpu_custom_call.1} parent=11 // pred_check
          %p371 = pneg %p261
        $region50: #{tpu_custom_call.1} parent=11 // pred_check_branch
          %373 = sbr.rel (%p371) target = $region52
        $region51: #{tpu_custom_call.1} parent=11 // pred_region
          _
        $region52: #{tpu_custom_call.1} parent=11 // pred_fallthru
          _
        // Predicated region
        $region53: #{tpu_custom_call.1} parent=11 // pred_check
          %p374 = pneg %p282
        $region54: #{tpu_custom_call.1} parent=11 // pred_check_branch
          %376 = sbr.rel (%p374) target = $region56
        $region55: #{tpu_custom_call.1} parent=11 // pred_region
          _
        $region56: #{tpu_custom_call.1} parent=11 // pred_fallthru
          _
        // Predicated region
        $region57: #{tpu_custom_call.1} parent=11 // pred_check
          %p377 = pneg %p303
        $region58: #{tpu_custom_call.1} parent=11 // pred_check_branch
          %379 = sbr.rel (%p377) target = $region60
        $region59: #{tpu_custom_call.1} parent=11 // pred_region
          _
        $region60: #{tpu_custom_call.1} parent=11 // pred_fallthru
          _
      $region12: #{tpu_custom_call.1} parent=5 // pred_fallthru
        _
      %p380 = scmp.lt.s32.totalorder %s25, 2
      // Predicated region
      $region61: #{tpu_custom_call.1} parent=5 // pred_check
        %p381 = pneg %p380
      $region62: #{tpu_custom_call.1} parent=5 // pred_check_branch
        %383 = sbr.rel (%p381) target = $region64
      $region63: #{tpu_custom_call.1} parent=5 // pred_region
        // Predicated region
        $region65: #{tpu_custom_call.1} parent=63 // pred_check
          %p384 = pneg %p45
        $region66: #{tpu_custom_call.1} parent=63 // pred_check_branch
          %386 = sbr.rel (%p384) target = $region68
        $region67: #{tpu_custom_call.1} parent=63 // pred_region
          %s387 = sand.u32 %s35, 1
          %s388 = scalar_lea.sflag [#allocation3], %s387
          %s389 = sand.u32 %s35, 1
          %s390 = smul.addr %s389, 8
          %s391 = scalar_lea.vmem [#allocation2], %s390
          %s393 = ssub.s32 128, 128
          %394 = vsyncadd %s388, %s393
          %s395 = smul.addr %s25, 128
          %s396 = scalar_lea.hbm %s0, %s395
          %s398 = sshll.u32 %s391, 4
          %s399 = int_to_ptr.vmem [resolvable:$true] %s398
          %401 = dma.hbm_to_vmem [thread:$0]  %s396, 128, %s399, %s388
        $region68: #{tpu_custom_call.1} parent=63 // pred_fallthru
          _
      $region64: #{tpu_custom_call.1} parent=5 // pred_fallthru
        _
      %p402 = scmp.le.s32.totalorder 1, %s25
      %p403 = scmp.lt.s32.totalorder %s25, 3
      %p404 = pnand %p402, %p403
      %p405 = pneg %p404
      // Predicated region
      $region69: #{tpu_custom_call.1} parent=5 // pred_check
        _
      $region70: #{tpu_custom_call.1} parent=5 // pred_check_branch
        %407 = sbr.rel (%p404) target = $region72
      $region71: #{tpu_custom_call.1} parent=5 // pred_region
        %s408 = ssub.s32 %s25, 1
        %s409 = sand.u32 %s38, 1
        %s410 = scalar_lea.sflag [#allocation3], %s409
        %s411 = sand.u32 %s38, 1
        %s412 = smul.addr %s411, 8
        %s413 = scalar_lea.vmem [#allocation2], %s412
        // Predicated region
        $region73: #{tpu_custom_call.1} parent=71 // pred_check
          %p414 = pneg %p51
        $region74: #{tpu_custom_call.1} parent=71 // pred_check_branch
          %416 = sbr.rel (%p414) target = $region76
        $region75: #{tpu_custom_call.1} parent=71 // pred_region
          %417 = dma.done %s410, 128
        $region76: #{tpu_custom_call.1} parent=71 // pred_fallthru
          _
        %s418 = sand.u32 %s38, 1
        %s419 = scalar_lea.sflag [#allocation3], %s418
        %s420 = sand.u32 %s38, 1
        %s421 = smul.addr %s420, 8
        %s422 = scalar_lea.vmem [#allocation2], %s421
        %p423 = pneg %p51
        %p424 = pneg %p48
        %p425 = pneg %p72
        %p426 = pneg %p69
        %p427 = pneg %p93
        %p428 = pneg %p90
        %p429 = pneg %p114
        %p430 = pneg %p111
        %p431 = pneg %p135
        %p432 = pneg %p132
        %p433 = pneg %p156
        %p434 = pneg %p153
        %p435 = pneg %p177
        %p436 = pneg %p174
        %p437 = pneg %p198
        %p438 = pneg %p195
        %p439 = pneg %p219
        %p440 = pneg %p216
        %p441 = pneg %p240
        %p442 = pneg %p237
        %p443 = pneg %p261
        %p444 = pneg %p258
        %p445 = pneg %p282
        %p446 = pneg %p279
        %p447 = pneg %p303
        %p448 = pneg %p300
        %p449 = pneg %p329
        %p450 = pneg %p326
        %s451 = sand.u32 %s316, 1
        %s452 = scalar_lea.sflag [#allocation4], %s451
        %s453 = sand.u32 %s316, 1
        %s454 = smul.addr %s453, 8
        %s455 = scalar_lea.vmem [#allocation5], %s454
        %v456 = vld [vmem:[%s413] sm:$0xff]
        %v457 = vld [vmem:[%s1] sm:$0x1]
        %v458 = vld [vmem:[%s2] sm:$0x1]
        %v459 = vld [vmem:[%s7] sm:$0x1]
        %v460 = vld [vmem:[%s8] sm:$0x1]
        %v461 = vld [vmem:[%s4] sm:$0x1]
        %v462 = vld [vmem:[%s6] sm:$0x1]
        %v463 = vld [vmem:[%s10] sm:$0x1]
        %v464 = vld [vmem:[%s12] sm:$0x1]
        %vm465 = vcmask 261120
        %v466 = vsel %vm465, %v456, 0.0
        %467 = vadd.xlane.f32.xlu0 %v466
        %v468 = vpop.xlane.xlu0 %467
        %v469 = vrcp.pop 32.0
        %v470 = vmul.f32 %v468, %v469
        %v471 = vsub.f32 %v456, %v470
        %v472 = vmul.f32 %v471, %v471
        %v473 = vsel %vm465, %v472, 0.0
        %474 = vadd.xlane.f32.xlu0 %v473
        %v475 = vpop.xlane.xlu0 %474
        %v476 = vmul.f32 %v475, %v469
        %v477 = vadd.f32 %v476, 1e-05
        %v478 = vrsqrt.pop %v477
        %v479 = vmul.f32 %v471, %v478
        %v481 = vlaneseq
        %v482 = vshrl.u32 %v481, 7
        %v483 = vsub.s32 0, %v482
        %v484 = vrot.slane %v457, %v483
        %v486 = vmul.f32 %v479, %v484
        %v488 = vlaneseq
        %v489 = vshrl.u32 %v488, 7
        %v490 = vsub.s32 0, %v489
        %v491 = vrot.slane %v458, %v490
        %v493 = vadd.f32 %v486, %v491
        %v494 = vld [vmem:[%s3] sm:$0xff]
        %v495 = vld [vmem:[%s3 + $0x8] sm:$0xff]
        %v496 = vld [vmem:[%s3 + $0x10] sm:$0xff]
        %v497 = vld [vmem:[%s3 + $0x18] sm:$0xff]
        %v499 = vlaneseq
        %v500 = vshrl.u32 %v499, 7
        %v501 = vsub.s32 0, %v500
        %v502 = vrot.slane %v461, %v501
        %v505 = vsel %vm465, %v493, 0
        %507 = vmatprep.subr.mxu0 0.0
        %508 = vmatpush1.msra.mxu0 %v494
        %509 = vmatprep.subr.mxu0 0.0
        %510 = vmatpush1.msra.mxu0 %v495
        %511 = vmatprep.subr.mxu0 0.0
        %512 = vmatpush1.msra.mxu0 %v496
        %513 = vmatprep.subr.mxu0 0.0
        %514 = vmatpush1.msra.mxu0 %v497
        %515 = vmatprep.subr.mxu0 0.0
        %516 = vmatpush1.msra.mxu0 0.0
        %517 = vmatprep.subr.mxu0 0.0
        %518 = vmatpush1.msra.mxu0 0.0
        %519 = vmatprep.subr.mxu0 0.0
        %520 = vmatpush1.msra.mxu0 0.0
        %521 = vmatprep.subr.mxu0 0.0
        %522 = vmatpush1.msra.mxu0 0.0
        %523 = vmatprep.subr.mxu0 0.0
        %524 = vmatpush1.msra.mxu0 0.0
        %525 = vmatprep.subr.mxu0 0.0
        %526 = vmatpush1.msra.mxu0 0.0
        %527 = vmatprep.subr.mxu0 0.0
        %528 = vmatpush1.msra.mxu0 0.0
        %529 = vmatprep.subr.mxu0 0.0
        %530 = vmatpush1.msra.mxu0 0.0
        %531 = vmatprep.subr.mxu0 0.0
        %532 = vmatpush1.msra.mxu0 0.0
        %533 = vmatprep.subr.mxu0 0.0
        %534 = vmatpush1.msra.mxu0 0.0
        %535 = vmatprep.subr.mxu0 0.0
        %536 = vmatpush1.msra.mxu0 0.0
        %537 = vmatprep.subr.mxu0 0.0
        %538 = vmatpush1.msra.mxu0 0.0
        %539 = vmatprep.subr.mxu0 0.0
        %540 = vmatpush1.msra.mxu0 0.0
        %541 = vmatprep.subr.mxu0 0.0
        %542 = vmatpush1.msra.mxu0 0.0
        %543 = vmatprep.subr.mxu0 0.0
        %544 = vmatpush1.msra.mxu0 0.0
        %545 = vmatprep.subr.mxu0 0.0
        %546 = vmatpush1.msra.mxu0 0.0
        %547 = vmatprep.subr.mxu0 0.0
        %548 = vmatpush1.msra.mxu0 0.0
        %549 = vmatprep.subr.mxu0 0.0
        %550 = vmatpush1.msra.mxu0 0.0
        %551 = vmatprep.subr.mxu0 0.0
        %552 = vmatpush1.msra.mxu0 0.0
        %553 = vmatprep.subr.mxu0 0.0
        %554 = vmatpush1.msra.mxu0 0.0
        %555 = vmatprep.subr.mxu0 0.0
        %556 = vmatpush1.msra.mxu0 0.0
        %557 = vmatprep.subr.mxu0 0.0
        %558 = vmatpush1.msra.mxu0 0.0
        %559 = vmatprep.subr.mxu0 0.0
        %560 = vmatpush1.msra.mxu0 0.0
        %561 = vmatprep.subr.mxu0 0.0
        %562 = vmatpush1.msra.mxu0 0.0
        %563 = vmatprep.subr.mxu0 0.0
        %564 = vmatpush1.msra.mxu0 0.0
        %565 = vmatprep.subr.mxu0 0.0
        %566 = vmatpush1.msra.mxu0 0.0
        %567 = vmatprep.subr.mxu0 0.0
        %568 = vmatpush1.msra.mxu0 0.0
        %569 = vmatprep.subr.mxu0 0.0
        %570 = vmatpush1.msra.mxu0 0.0
        %571 = vmatprep.mubr.f32.mxu0 0.0
        %572 = vmatmul.mubr.f32.gmra.mrb[0].mxu0 %v505
        %v573 = vpop.f32.mrb[0].mxu0
        %v574 = vadd.f32 %v502, %v573
        %v575 = vpop.f32.mrb[0].mxu0
        %576 = vdwg.mxu0
        %v577 = vmul.f32 %v574, 0.35355338
        %579 = vrot.lane.b32.xlu0 %v574, 96
        %v580 = vpop.permute.xlu0 %579
        %vm581 = vcmask 64512
        %v583 = vsel %vm581, %v577, 0
        %v585 = vsel %vm581, %v580, 0
        %587 = vmatprep.subr.mxu0 0.0
        %588 = vmatpush1.xpose.msra.mxu0 %v585
        %589 = vmatprep.subr.mxu0 0.0
        %590 = vmatpush1.xpose.msra.mxu0 0.0
        %591 = vmatprep.subr.mxu0 0.0
        %592 = vmatpush1.xpose.msra.mxu0 0.0
        %593 = vmatprep.subr.mxu0 0.0
        %594 = vmatpush1.xpose.msra.mxu0 0.0
        %595 = vmatprep.subr.mxu0 0.0
        %596 = vmatpush1.xpose.msra.mxu0 0.0
        %597 = vmatprep.subr.mxu0 0.0
        %598 = vmatpush1.xpose.msra.mxu0 0.0
        %599 = vmatprep.subr.mxu0 0.0
        %600 = vmatpush1.xpose.msra.mxu0 0.0
        %601 = vmatprep.subr.mxu0 0.0
        %602 = vmatpush1.xpose.msra.mxu0 0.0
        %603 = vmatprep.subr.mxu0 0.0
        %604 = vmatpush1.xpose.msra.mxu0 0.0
        %605 = vmatprep.subr.mxu0 0.0
        %606 = vmatpush1.xpose.msra.mxu0 0.0
        %607 = vmatprep.subr.mxu0 0.0
        %608 = vmatpush1.xpose.msra.mxu0 0.0
        %609 = vmatprep.subr.mxu0 0.0
        %610 = vmatpush1.xpose.msra.mxu0 0.0
        %611 = vmatprep.subr.mxu0 0.0
        %612 = vmatpush1.xpose.msra.mxu0 0.0
        %613 = vmatprep.subr.mxu0 0.0
        %614 = vmatpush1.xpose.msra.mxu0 0.0
        %615 = vmatprep.subr.mxu0 0.0
        %616 = vmatpush1.xpose.msra.mxu0 0.0
        %617 = vmatprep.subr.mxu0 0.0
        %618 = vmatpush1.xpose.msra.mxu0 0.0
        %619 = vmatprep.subr.mxu0 0.0
        %620 = vmatpush1.xpose.msra.mxu0 0.0
        %621 = vmatprep.subr.mxu0 0.0
        %622 = vmatpush1.xpose.msra.mxu0 0.0
        %623 = vmatprep.subr.mxu0 0.0
        %624 = vmatpush1.xpose.msra.mxu0 0.0
        %625 = vmatprep.subr.mxu0 0.0
        %626 = vmatpush1.xpose.msra.mxu0 0.0
        %627 = vmatprep.subr.mxu0 0.0
        %628 = vmatpush1.xpose.msra.mxu0 0.0
        %629 = vmatprep.subr.mxu0 0.0
        %630 = vmatpush1.xpose.msra.mxu0 0.0
        %631 = vmatprep.subr.mxu0 0.0
        %632 = vmatpush1.xpose.msra.mxu0 0.0
        %633 = vmatprep.subr.mxu0 0.0
        %634 = vmatpush1.xpose.msra.mxu0 0.0
        %635 = vmatprep.subr.mxu0 0.0
        %636 = vmatpush1.xpose.msra.mxu0 0.0
        %637 = vmatprep.subr.mxu0 0.0
        %638 = vmatpush1.xpose.msra.mxu0 0.0
        %639 = vmatprep.subr.mxu0 0.0
        %640 = vmatpush1.xpose.msra.mxu0 0.0
        %641 = vmatprep.subr.mxu0 0.0
        %642 = vmatpush1.xpose.msra.mxu0 0.0
        %643 = vmatprep.subr.mxu0 0.0
        %644 = vmatpush1.xpose.msra.mxu0 0.0
        %645 = vmatprep.subr.mxu0 0.0
        %646 = vmatpush1.xpose.msra.mxu0 0.0
        %647 = vmatprep.subr.mxu0 0.0
        %648 = vmatpush1.xpose.msra.mxu0 0.0
        %649 = vmatprep.subr.mxu0 0.0
        %650 = vmatpush1.xpose.msra.mxu0 0.0
        %651 = vmatprep.mubr.f32.mxu0 0.0
        %652 = vmatmul.mubr.f32.gmra.mrb[0].mxu0 %v583
        %v653 = vpop.f32.mrb[0].mxu0
        %v654 = vadd.f32 0.0, %v653
        %v655 = vpop.f32.mrb[0].mxu0
        %656 = vdwg.mxu0
        %v657 = vsel %vm581, %v654, -inf
        %658 = vmax.xlane.f32.xlu0 %v657
        %v659 = vpop.xlane.xlu0 %658
        %v660 = vsub.f32 %v654, %v659
        %v661 = vmul.f32 %v660, 1.442695
        %v662 = vpow.pop %v661
        %v663 = vsel %vm581, %v662, 0.0
        %664 = vadd.xlane.f32.xlu0 %v663
        %v665 = vpop.xlane.xlu0 %664
        %666 = vrot.lane.b32.xlu0 %v574, 64
        %v667 = vpop.permute.xlu0 %666
        %v670 = vsel %vm581, %v662, 0
        %672 = vmatprep.subr.mxu0 0.0
        %673 = vmatpush1.msra.mxu0 %v667
        %674 = vmatprep.subr.mxu0 0.0
        %675 = vmatpush1.msra.mxu0 0.0
        %676 = vmatprep.subr.mxu0 0.0
        %677 = vmatpush1.msra.mxu0 0.0
        %678 = vmatprep.subr.mxu0 0.0
        %679 = vmatpush1.msra.mxu0 0.0
        %680 = vmatprep.subr.mxu0 0.0
        %681 = vmatpush1.msra.mxu0 0.0
        %682 = vmatprep.subr.mxu0 0.0
        %683 = vmatpush1.msra.mxu0 0.0
        %684 = vmatprep.subr.mxu0 0.0
        %685 = vmatpush1.msra.mxu0 0.0
        %686 = vmatprep.subr.mxu0 0.0
        %687 = vmatpush1.msra.mxu0 0.0
        %688 = vmatprep.subr.mxu0 0.0
        %689 = vmatpush1.msra.mxu0 0.0
        %690 = vmatprep.subr.mxu0 0.0
        %691 = vmatpush1.msra.mxu0 0.0
        %692 = vmatprep.subr.mxu0 0.0
        %693 = vmatpush1.msra.mxu0 0.0
        %694 = vmatprep.subr.mxu0 0.0
        %695 = vmatpush1.msra.mxu0 0.0
        %696 = vmatprep.subr.mxu0 0.0
        %697 = vmatpush1.msra.mxu0 0.0
        %698 = vmatprep.subr.mxu0 0.0
        %699 = vmatpush1.msra.mxu0 0.0
        %700 = vmatprep.subr.mxu0 0.0
        %701 = vmatpush1.msra.mxu0 0.0
        %702 = vmatprep.subr.mxu0 0.0
        %703 = vmatpush1.msra.mxu0 0.0
        %704 = vmatprep.subr.mxu0 0.0
        %705 = vmatpush1.msra.mxu0 0.0
        %706 = vmatprep.subr.mxu0 0.0
        %707 = vmatpush1.msra.mxu0 0.0
        %708 = vmatprep.subr.mxu0 0.0
        %709 = vmatpush1.msra.mxu0 0.0
        %710 = vmatprep.subr.mxu0 0.0
        %711 = vmatpush1.msra.mxu0 0.0
        %712 = vmatprep.subr.mxu0 0.0
        %713 = vmatpush1.msra.mxu0 0.0
        %714 = vmatprep.subr.mxu0 0.0
        %715 = vmatpush1.msra.mxu0 0.0
        %716 = vmatprep.subr.mxu0 0.0
        %717 = vmatpush1.msra.mxu0 0.0
        %718 = vmatprep.subr.mxu0 0.0
        %719 = vmatpush1.msra.mxu0 0.0
        %720 = vmatprep.subr.mxu0 0.0
        %721 = vmatpush1.msra.mxu0 0.0
        %722 = vmatprep.subr.mxu0 0.0
        %723 = vmatpush1.msra.mxu0 0.0
        %724 = vmatprep.subr.mxu0 0.0
        %725 = vmatpush1.msra.mxu0 0.0
        %726 = vmatprep.subr.mxu0 0.0
        %727 = vmatpush1.msra.mxu0 0.0
        %728 = vmatprep.subr.mxu0 0.0
        %729 = vmatpush1.msra.mxu0 0.0
        %730 = vmatprep.subr.mxu0 0.0
        %731 = vmatpush1.msra.mxu0 0.0
        %732 = vmatprep.subr.mxu0 0.0
        %733 = vmatpush1.msra.mxu0 0.0
        %734 = vmatprep.subr.mxu0 0.0
        %735 = vmatpush1.msra.mxu0 0.0
        %736 = vmatprep.mubr.f32.mxu0 0.0
        %737 = vmatmul.mubr.f32.gmra.mrb[0].mxu0 %v670
        %v738 = vpop.f32.mrb[0].mxu0
        %v739 = vadd.f32 0.0, %v738
        %v740 = vpop.f32.mrb[0].mxu0
        %741 = vdwg.mxu0
        %v742 = vrcp.pop %v665
        %v743 = vmul.f32 %v739, %v742
        %744 = vrot.lane.b32.xlu0 %v577, 120
        %v745 = vpop.permute.xlu0 %744
        %746 = vrot.lane.b32.xlu0 %v574, 88
        %v747 = vpop.permute.xlu0 %746
        %v748 = vsel %vm581, %v745, 0
        %v750 = vsel %vm581, %v747, 0
        %752 = vmatprep.subr.mxu0 0.0
        %753 = vmatpush1.xpose.msra.mxu0 %v750
        %754 = vmatprep.subr.mxu0 0.0
        %755 = vmatpush1.xpose.msra.mxu0 0.0
        %756 = vmatprep.subr.mxu0 0.0
        %757 = vmatpush1.xpose.msra.mxu0 0.0
        %758 = vmatprep.subr.mxu0 0.0
        %759 = vmatpush1.xpose.msra.mxu0 0.0
        %760 = vmatprep.subr.mxu0 0.0
        %761 = vmatpush1.xpose.msra.mxu0 0.0
        %762 = vmatprep.subr.mxu0 0.0
        %763 = vmatpush1.xpose.msra.mxu0 0.0
        %764 = vmatprep.subr.mxu0 0.0
        %765 = vmatpush1.xpose.msra.mxu0 0.0
        %766 = vmatprep.subr.mxu0 0.0
        %767 = vmatpush1.xpose.msra.mxu0 0.0
        %768 = vmatprep.subr.mxu0 0.0
        %769 = vmatpush1.xpose.msra.mxu0 0.0
        %770 = vmatprep.subr.mxu0 0.0
        %771 = vmatpush1.xpose.msra.mxu0 0.0
        %772 = vmatprep.subr.mxu0 0.0
        %773 = vmatpush1.xpose.msra.mxu0 0.0
        %774 = vmatprep.subr.mxu0 0.0
        %775 = vmatpush1.xpose.msra.mxu0 0.0
        %776 = vmatprep.subr.mxu0 0.0
        %777 = vmatpush1.xpose.msra.mxu0 0.0
        %778 = vmatprep.subr.mxu0 0.0
        %779 = vmatpush1.xpose.msra.mxu0 0.0
        %780 = vmatprep.subr.mxu0 0.0
        %781 = vmatpush1.xpose.msra.mxu0 0.0
        %782 = vmatprep.subr.mxu0 0.0
        %783 = vmatpush1.xpose.msra.mxu0 0.0
        %784 = vmatprep.subr.mxu0 0.0
        %785 = vmatpush1.xpose.msra.mxu0 0.0
        %786 = vmatprep.subr.mxu0 0.0
        %787 = vmatpush1.xpose.msra.mxu0 0.0
        %788 = vmatprep.subr.mxu0 0.0
        %789 = vmatpush1.xpose.msra.mxu0 0.0
        %790 = vmatprep.subr.mxu0 0.0
        %791 = vmatpush1.xpose.msra.mxu0 0.0
        %792 = vmatprep.subr.mxu0 0.0
        %793 = vmatpush1.xpose.msra.mxu0 0.0
        %794 = vmatprep.subr.mxu0 0.0
        %795 = vmatpush1.xpose.msra.mxu0 0.0
        %796 = vmatprep.subr.mxu0 0.0
        %797 = vmatpush1.xpose.msra.mxu0 0.0
        %798 = vmatprep.subr.mxu0 0.0
        %799 = vmatpush1.xpose.msra.mxu0 0.0
        %800 = vmatprep.subr.mxu0 0.0
        %801 = vmatpush1.xpose.msra.mxu0 0.0
        %802 = vmatprep.subr.mxu0 0.0
        %803 = vmatpush1.xpose.msra.mxu0 0.0
        %804 = vmatprep.subr.mxu0 0.0
        %805 = vmatpush1.xpose.msra.mxu0 0.0
        %806 = vmatprep.subr.mxu0 0.0
        %807 = vmatpush1.xpose.msra.mxu0 0.0
        %808 = vmatprep.subr.mxu0 0.0
        %809 = vmatpush1.xpose.msra.mxu0 0.0
        %810 = vmatprep.subr.mxu0 0.0
        %811 = vmatpush1.xpose.msra.mxu0 0.0
        %812 = vmatprep.subr.mxu0 0.0
        %813 = vmatpush1.xpose.msra.mxu0 0.0
        %814 = vmatprep.subr.mxu0 0.0
        %815 = vmatpush1.xpose.msra.mxu0 0.0
        %816 = vmatprep.mubr.f32.mxu0 0.0
        %817 = vmatmul.mubr.f32.gmra.mrb[0].mxu0 %v748
        %v818 = vpop.f32.mrb[0].mxu0
        %v819 = vadd.f32 0.0, %v818
        %v820 = vpop.f32.mrb[0].mxu0
        %821 = vdwg.mxu0
        %v822 = vsel %vm581, %v819, -inf
        %823 = vmax.xlane.f32.xlu0 %v822
        %v824 = vpop.xlane.xlu0 %823
        %v825 = vsub.f32 %v819, %v824
        %v826 = vmul.f32 %v825, 1.442695
        %v827 = vpow.pop %v826
        %v828 = vsel %vm581, %v827, 0.0
        %829 = vadd.xlane.f32.xlu0 %v828
        %v830 = vpop.xlane.xlu0 %829
        %831 = vrot.lane.b32.xlu0 %v574, 56
        %v832 = vpop.permute.xlu0 %831
        %v835 = vsel %vm581, %v827, 0
        %837 = vmatprep.subr.mxu0 0.0
        %838 = vmatpush1.msra.mxu0 %v832
        %839 = vmatprep.subr.mxu0 0.0
        %840 = vmatpush1.msra.mxu0 0.0
        %841 = vmatprep.subr.mxu0 0.0
        %842 = vmatpush1.msra.mxu0 0.0
        %843 = vmatprep.subr.mxu0 0.0
        %844 = vmatpush1.msra.mxu0 0.0
        %845 = vmatprep.subr.mxu0 0.0
        %846 = vmatpush1.msra.mxu0 0.0
        %847 = vmatprep.subr.mxu0 0.0
        %848 = vmatpush1.msra.mxu0 0.0
        %849 = vmatprep.subr.mxu0 0.0
        %850 = vmatpush1.msra.mxu0 0.0
        %851 = vmatprep.subr.mxu0 0.0
        %852 = vmatpush1.msra.mxu0 0.0
        %853 = vmatprep.subr.mxu0 0.0
        %854 = vmatpush1.msra.mxu0 0.0
        %855 = vmatprep.subr.mxu0 0.0
        %856 = vmatpush1.msra.mxu0 0.0
        %857 = vmatprep.subr.mxu0 0.0
        %858 = vmatpush1.msra.mxu0 0.0
        %859 = vmatprep.subr.mxu0 0.0
        %860 = vmatpush1.msra.mxu0 0.0
        %861 = vmatprep.subr.mxu0 0.0
        %862 = vmatpush1.msra.mxu0 0.0
        %863 = vmatprep.subr.mxu0 0.0
        %864 = vmatpush1.msra.mxu0 0.0
        %865 = vmatprep.subr.mxu0 0.0
        %866 = vmatpush1.msra.mxu0 0.0
        %867 = vmatprep.subr.mxu0 0.0
        %868 = vmatpush1.msra.mxu0 0.0
        %869 = vmatprep.subr.mxu0 0.0
        %870 = vmatpush1.msra.mxu0 0.0
        %871 = vmatprep.subr.mxu0 0.0
        %872 = vmatpush1.msra.mxu0 0.0
        %873 = vmatprep.subr.mxu0 0.0
        %874 = vmatpush1.msra.mxu0 0.0
        %875 = vmatprep.subr.mxu0 0.0
        %876 = vmatpush1.msra.mxu0 0.0
        %877 = vmatprep.subr.mxu0 0.0
        %878 = vmatpush1.msra.mxu0 0.0
        %879 = vmatprep.subr.mxu0 0.0
        %880 = vmatpush1.msra.mxu0 0.0
        %881 = vmatprep.subr.mxu0 0.0
        %882 = vmatpush1.msra.mxu0 0.0
        %883 = vmatprep.subr.mxu0 0.0
        %884 = vmatpush1.msra.mxu0 0.0
        %885 = vmatprep.subr.mxu0 0.0
        %886 = vmatpush1.msra.mxu0 0.0
        %887 = vmatprep.subr.mxu0 0.0
        %888 = vmatpush1.msra.mxu0 0.0
        %889 = vmatprep.subr.mxu0 0.0
        %890 = vmatpush1.msra.mxu0 0.0
        %891 = vmatprep.subr.mxu0 0.0
        %892 = vmatpush1.msra.mxu0 0.0
        %893 = vmatprep.subr.mxu0 0.0
        %894 = vmatpush1.msra.mxu0 0.0
        %895 = vmatprep.subr.mxu0 0.0
        %896 = vmatpush1.msra.mxu0 0.0
        %897 = vmatprep.subr.mxu0 0.0
        %898 = vmatpush1.msra.mxu0 0.0
        %899 = vmatprep.subr.mxu0 0.0
        %900 = vmatpush1.msra.mxu0 0.0
        %901 = vmatprep.mubr.f32.mxu0 0.0
        %902 = vmatmul.mubr.f32.gmra.mrb[0].mxu0 %v835
        %v903 = vpop.f32.mrb[0].mxu0
        %v904 = vadd.f32 0.0, %v903
        %v905 = vpop.f32.mrb[0].mxu0
        %906 = vdwg.mxu0
        %v907 = vrcp.pop %v830
        %v908 = vmul.f32 %v904, %v907
        %909 = vrot.lane.b32.xlu0 %v577, 112
        %v910 = vpop.permute.xlu0 %909
        %911 = vrot.lane.b32.xlu0 %v574, 80
        %v912 = vpop.permute.xlu0 %911
        %v913 = vsel %vm581, %v910, 0
        %v915 = vsel %vm581, %v912, 0
        %917 = vmatprep.subr.mxu0 0.0
        %918 = vmatpush1.xpose.msra.mxu0 %v915
        %919 = vmatprep.subr.mxu0 0.0
        %920 = vmatpush1.xpose.msra.mxu0 0.0
        %921 = vmatprep.subr.mxu0 0.0
        %922 = vmatpush1.xpose.msra.mxu0 0.0
        %923 = vmatprep.subr.mxu0 0.0
        %924 = vmatpush1.xpose.msra.mxu0 0.0
        %925 = vmatprep.subr.mxu0 0.0
        %926 = vmatpush1.xpose.msra.mxu0 0.0
        %927 = vmatprep.subr.mxu0 0.0
        %928 = vmatpush1.xpose.msra.mxu0 0.0
        %929 = vmatprep.subr.mxu0 0.0
        %930 = vmatpush1.xpose.msra.mxu0 0.0
        %931 = vmatprep.subr.mxu0 0.0
        %932 = vmatpush1.xpose.msra.mxu0 0.0
        %933 = vmatprep.subr.mxu0 0.0
        %934 = vmatpush1.xpose.msra.mxu0 0.0
        %935 = vmatprep.subr.mxu0 0.0
        %936 = vmatpush1.xpose.msra.mxu0 0.0
        %937 = vmatprep.subr.mxu0 0.0
        %938 = vmatpush1.xpose.msra.mxu0 0.0
        %939 = vmatprep.subr.mxu0 0.0
        %940 = vmatpush1.xpose.msra.mxu0 0.0
        %941 = vmatprep.subr.mxu0 0.0
        %942 = vmatpush1.xpose.msra.mxu0 0.0
        %943 = vmatprep.subr.mxu0 0.0
        %944 = vmatpush1.xpose.msra.mxu0 0.0
        %945 = vmatprep.subr.mxu0 0.0
        %946 = vmatpush1.xpose.msra.mxu0 0.0
        %947 = vmatprep.subr.mxu0 0.0
        %948 = vmatpush1.xpose.msra.mxu0 0.0
        %949 = vmatprep.subr.mxu0 0.0
        %950 = vmatpush1.xpose.msra.mxu0 0.0
        %951 = vmatprep.subr.mxu0 0.0
        %952 = vmatpush1.xpose.msra.mxu0 0.0
        %953 = vmatprep.subr.mxu0 0.0
        %954 = vmatpush1.xpose.msra.mxu0 0.0
        %955 = vmatprep.subr.mxu0 0.0
        %956 = vmatpush1.xpose.msra.mxu0 0.0
        %957 = vmatprep.subr.mxu0 0.0
        %958 = vmatpush1.xpose.msra.mxu0 0.0
        %959 = vmatprep.subr.mxu0 0.0
        %960 = vmatpush1.xpose.msra.mxu0 0.0
        %961 = vmatprep.subr.mxu0 0.0
        %962 = vmatpush1.xpose.msra.mxu0 0.0
        %963 = vmatprep.subr.mxu0 0.0
        %964 = vmatpush1.xpose.msra.mxu0 0.0
        %965 = vmatprep.subr.mxu0 0.0
        %966 = vmatpush1.xpose.msra.mxu0 0.0
        %967 = vmatprep.subr.mxu0 0.0
        %968 = vmatpush1.xpose.msra.mxu0 0.0
        %969 = vmatprep.subr.mxu0 0.0
        %970 = vmatpush1.xpose.msra.mxu0 0.0
        %971 = vmatprep.subr.mxu0 0.0
        %972 = vmatpush1.xpose.msra.mxu0 0.0
        %973 = vmatprep.subr.mxu0 0.0
        %974 = vmatpush1.xpose.msra.mxu0 0.0
        %975 = vmatprep.subr.mxu0 0.0
        %976 = vmatpush1.xpose.msra.mxu0 0.0
        %977 = vmatprep.subr.mxu0 0.0
        %978 = vmatpush1.xpose.msra.mxu0 0.0
        %979 = vmatprep.subr.mxu0 0.0
        %980 = vmatpush1.xpose.msra.mxu0 0.0
        %981 = vmatprep.mubr.f32.mxu0 0.0
        %982 = vmatmul.mubr.f32.gmra.mrb[0].mxu0 %v913
        %v983 = vpop.f32.mrb[0].mxu0
        %v984 = vadd.f32 0.0, %v983
        %v985 = vpop.f32.mrb[0].mxu0
        %986 = vdwg.mxu0
        %v987 = vsel %vm581, %v984, -inf
        %988 = vmax.xlane.f32.xlu0 %v987
        %v989 = vpop.xlane.xlu0 %988
        %v990 = vsub.f32 %v984, %v989
        %v991 = vmul.f32 %v990, 1.442695
        %v992 = vpow.pop %v991
        %v993 = vsel %vm581, %v992, 0.0
        %994 = vadd.xlane.f32.xlu0 %v993
        %v995 = vpop.xlane.xlu0 %994
        %996 = vrot.lane.b32.xlu0 %v574, 48
        %v997 = vpop.permute.xlu0 %996
        %v1000 = vsel %vm581, %v992, 0
        %1002 = vmatprep.subr.mxu0 0.0
        %1003 = vmatpush1.msra.mxu0 %v997
        %1004 = vmatprep.subr.mxu0 0.0
        %1005 = vmatpush1.msra.mxu0 0.0
        %1006 = vmatprep.subr.mxu0 0.0
        %1007 = vmatpush1.msra.mxu0 0.0
        %1008 = vmatprep.subr.mxu0 0.0
        %1009 = vmatpush1.msra.mxu0 0.0
        %1010 = vmatprep.subr.mxu0 0.0
        %1011 = vmatpush1.msra.mxu0 0.0
        %1012 = vmatprep.subr.mxu0 0.0
        %1013 = vmatpush1.msra.mxu0 0.0
        %1014 = vmatprep.subr.mxu0 0.0
        %1015 = vmatpush1.msra.mxu0 0.0
        %1016 = vmatprep.subr.mxu0 0.0
        %1017 = vmatpush1.msra.mxu0 0.0
        %1018 = vmatprep.subr.mxu0 0.0
        %1019 = vmatpush1.msra.mxu0 0.0
        %1020 = vmatprep.subr.mxu0 0.0
        %1021 = vmatpush1.msra.mxu0 0.0
        %1022 = vmatprep.subr.mxu0 0.0
        %1023 = vmatpush1.msra.mxu0 0.0
        %1024 = vmatprep.subr.mxu0 0.0
        %1025 = vmatpush1.msra.mxu0 0.0
        %1026 = vmatprep.subr.mxu0 0.0
        %1027 = vmatpush1.msra.mxu0 0.0
        %1028 = vmatprep.subr.mxu0 0.0
        %1029 = vmatpush1.msra.mxu0 0.0
        %1030 = vmatprep.subr.mxu0 0.0
        %1031 = vmatpush1.msra.mxu0 0.0
        %1032 = vmatprep.subr.mxu0 0.0
        %1033 = vmatpush1.msra.mxu0 0.0
        %1034 = vmatprep.subr.mxu0 0.0
        %1035 = vmatpush1.msra.mxu0 0.0
        %1036 = vmatprep.subr.mxu0 0.0
        %1037 = vmatpush1.msra.mxu0 0.0
        %1038 = vmatprep.subr.mxu0 0.0
        %1039 = vmatpush1.msra.mxu0 0.0
        %1040 = vmatprep.subr.mxu0 0.0
        %1041 = vmatpush1.msra.mxu0 0.0
        %1042 = vmatprep.subr.mxu0 0.0
        %1043 = vmatpush1.msra.mxu0 0.0
        %1044 = vmatprep.subr.mxu0 0.0
        %1045 = vmatpush1.msra.mxu0 0.0
        %1046 = vmatprep.subr.mxu0 0.0
        %1047 = vmatpush1.msra.mxu0 0.0
        %1048 = vmatprep.subr.mxu0 0.0
        %1049 = vmatpush1.msra.mxu0 0.0
        %1050 = vmatprep.subr.mxu0 0.0
        %1051 = vmatpush1.msra.mxu0 0.0
        %1052 = vmatprep.subr.mxu0 0.0
        %1053 = vmatpush1.msra.mxu0 0.0
        %1054 = vmatprep.subr.mxu0 0.0
        %1055 = vmatpush1.msra.mxu0 0.0
        %1056 = vmatprep.subr.mxu0 0.0
        %1057 = vmatpush1.msra.mxu0 0.0
        %1058 = vmatprep.subr.mxu0 0.0
        %1059 = vmatpush1.msra.mxu0 0.0
        %1060 = vmatprep.subr.mxu0 0.0
        %1061 = vmatpush1.msra.mxu0 0.0
        %1062 = vmatprep.subr.mxu0 0.0
        %1063 = vmatpush1.msra.mxu0 0.0
        %1064 = vmatprep.subr.mxu0 0.0
        %1065 = vmatpush1.msra.mxu0 0.0
        %1066 = vmatprep.mubr.f32.mxu0 0.0
        %1067 = vmatmul.mubr.f32.gmra.mrb[0].mxu0 %v1000
        %v1068 = vpop.f32.mrb[0].mxu0
        %v1069 = vadd.f32 0.0, %v1068
        %v1070 = vpop.f32.mrb[0].mxu0
        %1071 = vdwg.mxu0
        %v1072 = vrcp.pop %v995
        %v1073 = vmul.f32 %v1069, %v1072
        %1074 = vrot.lane.b32.xlu0 %v577, 104
        %v1075 = vpop.permute.xlu0 %1074
        %1076 = vrot.lane.b32.xlu0 %v574, 72
        %v1077 = vpop.permute.xlu0 %1076
        %v1078 = vsel %vm581, %v1075, 0
        %v1080 = vsel %vm581, %v1077, 0
        %1082 = vmatprep.subr.mxu0 0.0
        %1083 = vmatpush1.xpose.msra.mxu0 %v1080
        %1084 = vmatprep.subr.mxu0 0.0
        %1085 = vmatpush1.xpose.msra.mxu0 0.0
        %1086 = vmatprep.subr.mxu0 0.0
        %1087 = vmatpush1.xpose.msra.mxu0 0.0
        %1088 = vmatprep.subr.mxu0 0.0
        %1089 = vmatpush1.xpose.msra.mxu0 0.0
        %1090 = vmatprep.subr.mxu0 0.0
        %1091 = vmatpush1.xpose.msra.mxu0 0.0
        %1092 = vmatprep.subr.mxu0 0.0
        %1093 = vmatpush1.xpose.msra.mxu0 0.0
        %1094 = vmatprep.subr.mxu0 0.0
        %1095 = vmatpush1.xpose.msra.mxu0 0.0
        %1096 = vmatprep.subr.mxu0 0.0
        %1097 = vmatpush1.xpose.msra.mxu0 0.0
        %1098 = vmatprep.subr.mxu0 0.0
        %1099 = vmatpush1.xpose.msra.mxu0 0.0
        %1100 = vmatprep.subr.mxu0 0.0
        %1101 = vmatpush1.xpose.msra.mxu0 0.0
        %1102 = vmatprep.subr.mxu0 0.0
        %1103 = vmatpush1.xpose.msra.mxu0 0.0
        %1104 = vmatprep.subr.mxu0 0.0
        %1105 = vmatpush1.xpose.msra.mxu0 0.0
        %1106 = vmatprep.subr.mxu0 0.0
        %1107 = vmatpush1.xpose.msra.mxu0 0.0
        %1108 = vmatprep.subr.mxu0 0.0
        %1109 = vmatpush1.xpose.msra.mxu0 0.0
        %1110 = vmatprep.subr.mxu0 0.0
        %1111 = vmatpush1.xpose.msra.mxu0 0.0
        %1112 = vmatprep.subr.mxu0 0.0
        %1113 = vmatpush1.xpose.msra.mxu0 0.0
        %1114 = vmatprep.subr.mxu0 0.0
        %1115 = vmatpush1.xpose.msra.mxu0 0.0
        %1116 = vmatprep.subr.mxu0 0.0
        %1117 = vmatpush1.xpose.msra.mxu0 0.0
        %1118 = vmatprep.subr.mxu0 0.0
        %1119 = vmatpush1.xpose.msra.mxu0 0.0
        %1120 = vmatprep.subr.mxu0 0.0
        %1121 = vmatpush1.xpose.msra.mxu0 0.0
        %1122 = vmatprep.subr.mxu0 0.0
        %1123 = vmatpush1.xpose.msra.mxu0 0.0
        %1124 = vmatprep.subr.mxu0 0.0
        %1125 = vmatpush1.xpose.msra.mxu0 0.0
        %1126 = vmatprep.subr.mxu0 0.0
        %1127 = vmatpush1.xpose.msra.mxu0 0.0
        %1128 = vmatprep.subr.mxu0 0.0
        %1129 = vmatpush1.xpose.msra.mxu0 0.0
        %1130 = vmatprep.subr.mxu0 0.0
        %1131 = vmatpush1.xpose.msra.mxu0 0.0
        %1132 = vmatprep.subr.mxu0 0.0
        %1133 = vmatpush1.xpose.msra.mxu0 0.0
        %1134 = vmatprep.subr.mxu0 0.0
        %1135 = vmatpush1.xpose.msra.mxu0 0.0
        %1136 = vmatprep.subr.mxu0 0.0
        %1137 = vmatpush1.xpose.msra.mxu0 0.0
        %1138 = vmatprep.subr.mxu0 0.0
        %1139 = vmatpush1.xpose.msra.mxu0 0.0
        %1140 = vmatprep.subr.mxu0 0.0
        %1141 = vmatpush1.xpose.msra.mxu0 0.0
        %1142 = vmatprep.subr.mxu0 0.0
        %1143 = vmatpush1.xpose.msra.mxu0 0.0
        %1144 = vmatprep.subr.mxu0 0.0
        %1145 = vmatpush1.xpose.msra.mxu0 0.0
        %1146 = vmatprep.mubr.f32.mxu0 0.0
        %1147 = vmatmul.mubr.f32.gmra.mrb[0].mxu0 %v1078
        %v1148 = vpop.f32.mrb[0].mxu0
        %v1149 = vadd.f32 0.0, %v1148
        %v1150 = vpop.f32.mrb[0].mxu0
        %1151 = vdwg.mxu0
        %v1152 = vsel %vm581, %v1149, -inf
        %1153 = vmax.xlane.f32.xlu0 %v1152
        %v1154 = vpop.xlane.xlu0 %1153
        %v1155 = vsub.f32 %v1149, %v1154
        %v1156 = vmul.f32 %v1155, 1.442695
        %v1157 = vpow.pop %v1156
        %v1158 = vsel %vm581, %v1157, 0.0
        %1159 = vadd.xlane.f32.xlu0 %v1158
        %v1160 = vpop.xlane.xlu0 %1159
        %1161 = vrot.lane.b32.xlu0 %v574, 40
        %v1162 = vpop.permute.xlu0 %1161
        %v1165 = vsel %vm581, %v1157, 0
        %1167 = vmatprep.subr.mxu0 0.0
        %1168 = vmatpush1.msra.mxu0 %v1162
        %1169 = vmatprep.subr.mxu0 0.0
        %1170 = vmatpush1.msra.mxu0 0.0
        %1171 = vmatprep.subr.mxu0 0.0
        %1172 = vmatpush1.msra.mxu0 0.0
        %1173 = vmatprep.subr.mxu0 0.0
        %1174 = vmatpush1.msra.mxu0 0.0
        %1175 = vmatprep.subr.mxu0 0.0
        %1176 = vmatpush1.msra.mxu0 0.0
        %1177 = vmatprep.subr.mxu0 0.0
        %1178 = vmatpush1.msra.mxu0 0.0
        %1179 = vmatprep.subr.mxu0 0.0
        %1180 = vmatpush1.msra.mxu0 0.0
        %1181 = vmatprep.subr.mxu0 0.0
        %1182 = vmatpush1.msra.mxu0 0.0
        %1183 = vmatprep.subr.mxu0 0.0
        %1184 = vmatpush1.msra.mxu0 0.0
        %1185 = vmatprep.subr.mxu0 0.0
        %1186 = vmatpush1.msra.mxu0 0.0
        %1187 = vmatprep.subr.mxu0 0.0
        %1188 = vmatpush1.msra.mxu0 0.0
        %1189 = vmatprep.subr.mxu0 0.0
        %1190 = vmatpush1.msra.mxu0 0.0
        %1191 = vmatprep.subr.mxu0 0.0
        %1192 = vmatpush1.msra.mxu0 0.0
        %1193 = vmatprep.subr.mxu0 0.0
        %1194 = vmatpush1.msra.mxu0 0.0
        %1195 = vmatprep.subr.mxu0 0.0
        %1196 = vmatpush1.msra.mxu0 0.0
        %1197 = vmatprep.subr.mxu0 0.0
        %1198 = vmatpush1.msra.mxu0 0.0
        %1199 = vmatprep.subr.mxu0 0.0
        %1200 = vmatpush1.msra.mxu0 0.0
        %1201 = vmatprep.subr.mxu0 0.0
        %1202 = vmatpush1.msra.mxu0 0.0
        %1203 = vmatprep.subr.mxu0 0.0
        %1204 = vmatpush1.msra.mxu0 0.0
        %1205 = vmatprep.subr.mxu0 0.0
        %1206 = vmatpush1.msra.mxu0 0.0
        %1207 = vmatprep.subr.mxu0 0.0
        %1208 = vmatpush1.msra.mxu0 0.0
        %1209 = vmatprep.subr.mxu0 0.0
        %1210 = vmatpush1.msra.mxu0 0.0
        %1211 = vmatprep.subr.mxu0 0.0
        %1212 = vmatpush1.msra.mxu0 0.0
        %1213 = vmatprep.subr.mxu0 0.0
        %1214 = vmatpush1.msra.mxu0 0.0
        %1215 = vmatprep.subr.mxu0 0.0
        %1216 = vmatpush1.msra.mxu0 0.0
        %1217 = vmatprep.subr.mxu0 0.0
        %1218 = vmatpush1.msra.mxu0 0.0
        %1219 = vmatprep.subr.mxu0 0.0
        %1220 = vmatpush1.msra.mxu0 0.0
        %1221 = vmatprep.subr.mxu0 0.0
        %1222 = vmatpush1.msra.mxu0 0.0
        %1223 = vmatprep.subr.mxu0 0.0
        %1224 = vmatpush1.msra.mxu0 0.0
        %1225 = vmatprep.subr.mxu0 0.0
        %1226 = vmatpush1.msra.mxu0 0.0
        %1227 = vmatprep.subr.mxu0 0.0
        %1228 = vmatpush1.msra.mxu0 0.0
        %1229 = vmatprep.subr.mxu0 0.0
        %1230 = vmatpush1.msra.mxu0 0.0
        %1231 = vmatprep.mubr.f32.mxu0 0.0
        %1232 = vmatmul.mubr.f32.gmra.mrb[0].mxu0 %v1165
        %v1233 = vpop.f32.mrb[0].mxu0
        %v1234 = vadd.f32 0.0, %v1233
        %v1235 = vpop.f32.mrb[0].mxu0
        %1236 = vdwg.mxu0
        %v1237 = vrcp.pop %v1160
        %v1238 = vmul.f32 %v1234, %v1237
        %1240 = vrot.lane.b32.xlu0 %v908, 8
        %v1241 = vpop.permute.xlu0 %1240
        %1244 = vrot.lane.b32.xlu0 %v1073, 16
        %v1245 = vpop.permute.xlu0 %1244
        %1248 = vrot.lane.b32.xlu0 %v1238, 24
        %v1249 = vpop.permute.xlu0 %1248
        %v1251 = vsel %vm581, %v743, %v1241
        %vm1252 = vcmask 130048
        %v1253 = vsel %vm1252, %v1251, %v1245
        %vm1254 = vcmask 195584
        %v1255 = vsel %vm1254, %v1253, %v1249
        %v1256 = vld [vmem:[%s5] sm:$0xff]
        %v1257 = vld [vmem:[%s5 + $0x8] sm:$0xff]
        %v1258 = vld [vmem:[%s5 + $0x10] sm:$0xff]
        %v1259 = vld [vmem:[%s5 + $0x18] sm:$0xff]
        %v1261 = vlaneseq
        %v1262 = vshrl.u32 %v1261, 7
        %v1263 = vsub.s32 0, %v1262
        %v1264 = vrot.slane %v462, %v1263
        %v1267 = vsel %vm465, %v1255, 0
        %1269 = vmatprep.subr.mxu0 0.0
        %1270 = vmatpush1.msra.mxu0 %v1256
        %1271 = vmatprep.subr.mxu0 0.0
        %1272 = vmatpush1.msra.mxu0 %v1257
        %1273 = vmatprep.subr.mxu0 0.0
        %1274 = vmatpush1.msra.mxu0 %v1258
        %1275 = vmatprep.subr.mxu0 0.0
        %1276 = vmatpush1.msra.mxu0 %v1259
        %1277 = vmatprep.subr.mxu0 0.0
        %1278 = vmatpush1.msra.mxu0 0.0
        %1279 = vmatprep.subr.mxu0 0.0
        %1280 = vmatpush1.msra.mxu0 0.0
        %1281 = vmatprep.subr.mxu0 0.0
        %1282 = vmatpush1.msra.mxu0 0.0
        %1283 = vmatprep.subr.mxu0 0.0
        %1284 = vmatpush1.msra.mxu0 0.0
        %1285 = vmatprep.subr.mxu0 0.0
        %1286 = vmatpush1.msra.mxu0 0.0
        %1287 = vmatprep.subr.mxu0 0.0
        %1288 = vmatpush1.msra.mxu0 0.0
        %1289 = vmatprep.subr.mxu0 0.0
        %1290 = vmatpush1.msra.mxu0 0.0
        %1291 = vmatprep.subr.mxu0 0.0
        %1292 = vmatpush1.msra.mxu0 0.0
        %1293 = vmatprep.subr.mxu0 0.0
        %1294 = vmatpush1.msra.mxu0 0.0
        %1295 = vmatprep.subr.mxu0 0.0
        %1296 = vmatpush1.msra.mxu0 0.0
        %1297 = vmatprep.subr.mxu0 0.0
        %1298 = vmatpush1.msra.mxu0 0.0
        %1299 = vmatprep.subr.mxu0 0.0
        %1300 = vmatpush1.msra.mxu0 0.0
        %1301 = vmatprep.subr.mxu0 0.0
        %1302 = vmatpush1.msra.mxu0 0.0
        %1303 = vmatprep.subr.mxu0 0.0
        %1304 = vmatpush1.msra.mxu0 0.0
        %1305 = vmatprep.subr.mxu0 0.0
        %1306 = vmatpush1.msra.mxu0 0.0
        %1307 = vmatprep.subr.mxu0 0.0
        %1308 = vmatpush1.msra.mxu0 0.0
        %1309 = vmatprep.subr.mxu0 0.0
        %1310 = vmatpush1.msra.mxu0 0.0
        %1311 = vmatprep.subr.mxu0 0.0
        %1312 = vmatpush1.msra.mxu0 0.0
        %1313 = vmatprep.subr.mxu0 0.0
        %1314 = vmatpush1.msra.mxu0 0.0
        %1315 = vmatprep.subr.mxu0 0.0
        %1316 = vmatpush1.msra.mxu0 0.0
        %1317 = vmatprep.subr.mxu0 0.0
        %1318 = vmatpush1.msra.mxu0 0.0
        %1319 = vmatprep.subr.mxu0 0.0
        %1320 = vmatpush1.msra.mxu0 0.0
        %1321 = vmatprep.subr.mxu0 0.0
        %1322 = vmatpush1.msra.mxu0 0.0
        %1323 = vmatprep.subr.mxu0 0.0
        %1324 = vmatpush1.msra.mxu0 0.0
        %1325 = vmatprep.subr.mxu0 0.0
        %1326 = vmatpush1.msra.mxu0 0.0
        %1327 = vmatprep.subr.mxu0 0.0
        %1328 = vmatpush1.msra.mxu0 0.0
        %1329 = vmatprep.subr.mxu0 0.0
        %1330 = vmatpush1.msra.mxu0 0.0
        %1331 = vmatprep.subr.mxu0 0.0
        %1332 = vmatpush1.msra.mxu0 0.0
        %1333 = vmatprep.mubr.f32.mxu0 0.0
        %1334 = vmatmul.mubr.f32.gmra.mrb[0].mxu0 %v1267
        %v1335 = vpop.f32.mrb[0].mxu0
        %v1336 = vadd.f32 %v1264, %v1335
        %v1337 = vpop.f32.mrb[0].mxu0
        %1338 = vdwg.mxu0
        %v1339 = vadd.f32 %v456, %v1336
        %v1340 = vsel %vm465, %v1339, 0.0
        %1341 = vadd.xlane.f32.xlu0 %v1340
        %v1342 = vpop.xlane.xlu0 %1341
        %v1343 = vmul.f32 %v1342, %v469
        %v1344 = vsub.f32 %v1339, %v1343
        %v1345 = vmul.f32 %v1344, %v1344
        %v1346 = vsel %vm465, %v1345, 0.0
        %1347 = vadd.xlane.f32.xlu0 %v1346
        %v1348 = vpop.xlane.xlu0 %1347
        %v1349 = vmul.f32 %v1348, %v469
        %v1350 = vadd.f32 %v1349, 1e-05
        %v1351 = vrsqrt.pop %v1350
        %v1352 = vmul.f32 %v1344, %v1351
        %v1354 = vlaneseq
        %v1355 = vshrl.u32 %v1354, 7
        %v1356 = vsub.s32 0, %v1355
        %v1357 = vrot.slane %v459, %v1356
        %v1359 = vmul.f32 %v1352, %v1357
        %v1361 = vlaneseq
        %v1362 = vshrl.u32 %v1361, 7
        %v1363 = vsub.s32 0, %v1362
        %v1364 = vrot.slane %v460, %v1363
        %v1366 = vadd.f32 %v1359, %v1364
        %v1367 = vld [vmem:[%s9] sm:$0xff]
        %v1368 = vld [vmem:[%s9 + $0x8] sm:$0xff]
        %v1369 = vld [vmem:[%s9 + $0x10] sm:$0xff]
        %v1370 = vld [vmem:[%s9 + $0x18] sm:$0xff]
        %v1372 = vlaneseq
        %v1373 = vshrl.u32 %v1372, 7
        %v1374 = vsub.s32 0, %v1373
        %v1375 = vrot.slane %v463, %v1374
        %v1378 = vsel %vm465, %v1366, 0
        %1380 = vmatprep.subr.mxu0 0.0
        %1381 = vmatpush1.msra.mxu0 %v1367
        %1382 = vmatprep.subr.mxu0 0.0
        %1383 = vmatpush1.msra.mxu0 %v1368
        %1384 = vmatprep.subr.mxu0 0.0
        %1385 = vmatpush1.msra.mxu0 %v1369
        %1386 = vmatprep.subr.mxu0 0.0
        %1387 = vmatpush1.msra.mxu0 %v1370
        %1388 = vmatprep.subr.mxu0 0.0
        %1389 = vmatpush1.msra.mxu0 0.0
        %1390 = vmatprep.subr.mxu0 0.0
        %1391 = vmatpush1.msra.mxu0 0.0
        %1392 = vmatprep.subr.mxu0 0.0
        %1393 = vmatpush1.msra.mxu0 0.0
        %1394 = vmatprep.subr.mxu0 0.0
        %1395 = vmatpush1.msra.mxu0 0.0
        %1396 = vmatprep.subr.mxu0 0.0
        %1397 = vmatpush1.msra.mxu0 0.0
        %1398 = vmatprep.subr.mxu0 0.0
        %1399 = vmatpush1.msra.mxu0 0.0
        %1400 = vmatprep.subr.mxu0 0.0
        %1401 = vmatpush1.msra.mxu0 0.0
        %1402 = vmatprep.subr.mxu0 0.0
        %1403 = vmatpush1.msra.mxu0 0.0
        %1404 = vmatprep.subr.mxu0 0.0
        %1405 = vmatpush1.msra.mxu0 0.0
        %1406 = vmatprep.subr.mxu0 0.0
        %1407 = vmatpush1.msra.mxu0 0.0
        %1408 = vmatprep.subr.mxu0 0.0
        %1409 = vmatpush1.msra.mxu0 0.0
        %1410 = vmatprep.subr.mxu0 0.0
        %1411 = vmatpush1.msra.mxu0 0.0
        %1412 = vmatprep.subr.mxu0 0.0
        %1413 = vmatpush1.msra.mxu0 0.0
        %1414 = vmatprep.subr.mxu0 0.0
        %1415 = vmatpush1.msra.mxu0 0.0
        %1416 = vmatprep.subr.mxu0 0.0
        %1417 = vmatpush1.msra.mxu0 0.0
        %1418 = vmatprep.subr.mxu0 0.0
        %1419 = vmatpush1.msra.mxu0 0.0
        %1420 = vmatprep.subr.mxu0 0.0
        %1421 = vmatpush1.msra.mxu0 0.0
        %1422 = vmatprep.subr.mxu0 0.0
        %1423 = vmatpush1.msra.mxu0 0.0
        %1424 = vmatprep.subr.mxu0 0.0
        %1425 = vmatpush1.msra.mxu0 0.0
        %1426 = vmatprep.subr.mxu0 0.0
        %1427 = vmatpush1.msra.mxu0 0.0
        %1428 = vmatprep.subr.mxu0 0.0
        %1429 = vmatpush1.msra.mxu0 0.0
        %1430 = vmatprep.subr.mxu0 0.0
        %1431 = vmatpush1.msra.mxu0 0.0
        %1432 = vmatprep.subr.mxu0 0.0
        %1433 = vmatpush1.msra.mxu0 0.0
        %1434 = vmatprep.subr.mxu0 0.0
        %1435 = vmatpush1.msra.mxu0 0.0
        %1436 = vmatprep.subr.mxu0 0.0
        %1437 = vmatpush1.msra.mxu0 0.0
        %1438 = vmatprep.subr.mxu0 0.0
        %1439 = vmatpush1.msra.mxu0 0.0
        %1440 = vmatprep.subr.mxu0 0.0
        %1441 = vmatpush1.msra.mxu0 0.0
        %1442 = vmatprep.subr.mxu0 0.0
        %1443 = vmatpush1.msra.mxu0 0.0
        %1444 = vmatprep.mubr.f32.mxu0 0.0
        %1445 = vmatmul.mubr.f32.gmra.mrb[0].mxu0 %v1378
        %v1446 = vpop.f32.mrb[0].mxu0
        %v1447 = vadd.f32 %v1375, %v1446
        %v1448 = vpop.f32.mrb[0].mxu0
        %1449 = vdwg.mxu0
        %v1450 = vmul.f32 %v1447, 0.5
        %v1451 = vmul.f32 %v1447, 0.70710677
        %v1452 = verf.f32.pop %v1451
        %v1453 = vadd.f32 %v1452, 1.0
        %v1454 = vmul.f32 %v1450, %v1453
        %v1455 = vld [vmem:[%s11] sm:$0xff]
        %v1456 = vld [vmem:[%s11 + $0x8] sm:$0xff]
        %v1457 = vld [vmem:[%s11 + $0x10] sm:$0xff]
        %v1458 = vld [vmem:[%s11 + $0x18] sm:$0xff]
        %v1459 = vld [vmem:[%s11 + $0x20] sm:$0xff]
        %v1460 = vld [vmem:[%s11 + $0x28] sm:$0xff]
        %v1461 = vld [vmem:[%s11 + $0x30] sm:$0xff]
        %v1462 = vld [vmem:[%s11 + $0x38] sm:$0xff]
        %v1464 = vlaneseq
        %v1465 = vshrl.u32 %v1464, 7
        %v1466 = vsub.s32 0, %v1465
        %v1467 = vrot.slane %v464, %v1466
        %vm1469 = vcmask 523264
        %v1471 = vsel %vm1469, %v1454, 0
        %1473 = vmatprep.subr.mxu0 0.0
        %1474 = vmatpush1.msra.mxu0 %v1455
        %1475 = vmatprep.subr.mxu0 0.0
        %1476 = vmatpush1.msra.mxu0 %v1456
        %1477 = vmatprep.subr.mxu0 0.0
        %1478 = vmatpush1.msra.mxu0 %v1457
        %1479 = vmatprep.subr.mxu0 0.0
        %1480 = vmatpush1.msra.mxu0 %v1458
        %1481 = vmatprep.subr.mxu0 0.0
        %1482 = vmatpush1.msra.mxu0 %v1459
        %1483 = vmatprep.subr.mxu0 0.0
        %1484 = vmatpush1.msra.mxu0 %v1460
        %1485 = vmatprep.subr.mxu0 0.0
        %1486 = vmatpush1.msra.mxu0 %v1461
        %1487 = vmatprep.subr.mxu0 0.0
        %1488 = vmatpush1.msra.mxu0 %v1462
        %1489 = vmatprep.subr.mxu0 0.0
        %1490 = vmatpush1.msra.mxu0 0.0
        %1491 = vmatprep.subr.mxu0 0.0
        %1492 = vmatpush1.msra.mxu0 0.0
        %1493 = vmatprep.subr.mxu0 0.0
        %1494 = vmatpush1.msra.mxu0 0.0
        %1495 = vmatprep.subr.mxu0 0.0
        %1496 = vmatpush1.msra.mxu0 0.0
        %1497 = vmatprep.subr.mxu0 0.0
        %1498 = vmatpush1.msra.mxu0 0.0
        %1499 = vmatprep.subr.mxu0 0.0
        %1500 = vmatpush1.msra.mxu0 0.0
        %1501 = vmatprep.subr.mxu0 0.0
        %1502 = vmatpush1.msra.mxu0 0.0
        %1503 = vmatprep.subr.mxu0 0.0
        %1504 = vmatpush1.msra.mxu0 0.0
        %1505 = vmatprep.subr.mxu0 0.0
        %1506 = vmatpush1.msra.mxu0 0.0
        %1507 = vmatprep.subr.mxu0 0.0
        %1508 = vmatpush1.msra.mxu0 0.0
        %1509 = vmatprep.subr.mxu0 0.0
        %1510 = vmatpush1.msra.mxu0 0.0
        %1511 = vmatprep.subr.mxu0 0.0
        %1512 = vmatpush1.msra.mxu0 0.0
        %1513 = vmatprep.subr.mxu0 0.0
        %1514 = vmatpush1.msra.mxu0 0.0
        %1515 = vmatprep.subr.mxu0 0.0
        %1516 = vmatpush1.msra.mxu0 0.0
        %1517 = vmatprep.subr.mxu0 0.0
        %1518 = vmatpush1.msra.mxu0 0.0
        %1519 = vmatprep.subr.mxu0 0.0
        %1520 = vmatpush1.msra.mxu0 0.0
        %1521 = vmatprep.subr.mxu0 0.0
        %1522 = vmatpush1.msra.mxu0 0.0
        %1523 = vmatprep.subr.mxu0 0.0
        %1524 = vmatpush1.msra.mxu0 0.0
        %1525 = vmatprep.subr.mxu0 0.0
        %1526 = vmatpush1.msra.mxu0 0.0
        %1527 = vmatprep.subr.mxu0 0.0
        %1528 = vmatpush1.msra.mxu0 0.0
        %1529 = vmatprep.subr.mxu0 0.0
        %1530 = vmatpush1.msra.mxu0 0.0
        %1531 = vmatprep.subr.mxu0 0.0
        %1532 = vmatpush1.msra.mxu0 0.0
        %1533 = vmatprep.subr.mxu0 0.0
        %1534 = vmatpush1.msra.mxu0 0.0
        %1535 = vmatprep.subr.mxu0 0.0
        %1536 = vmatpush1.msra.mxu0 0.0
        %1537 = vmatprep.mubr.f32.mxu0 0.0
        %1538 = vmatmul.mubr.f32.gmra.mrb[0].mxu0 %v1471
        %v1539 = vpop.f32.mrb[0].mxu0
        %v1540 = vadd.f32 %v1467, %v1539
        %v1541 = vpop.f32.mrb[0].mxu0
        %1542 = vdwg.mxu0
        %v1543 = vadd.f32 %v1339, %v1540
        %1544 = vst.msk [vmem:[%s455] sm:$0xff] %vm465, %v1543
        %s1545 = sand.u32 %s316, 1
        %s1546 = scalar_lea.sflag [#allocation4], %s1545
        %s1547 = sand.u32 %s316, 1
        %s1548 = smul.addr %s1547, 8
        %s1549 = scalar_lea.vmem [#allocation5], %s1548
        // Predicated region
        $region77: #{tpu_custom_call.1} parent=71 // pred_check
          %p1550 = pneg %p326
        $region78: #{tpu_custom_call.1} parent=71 // pred_check_branch
          %1552 = sbr.rel (%p1550) target = $region80
        $region79: #{tpu_custom_call.1} parent=71 // pred_region
          %s1554 = ssub.s32 128, 128
          %1555 = vsyncadd %s1546, %s1554
          %s1556 = smul.addr %s30, 128
          %s1557 = scalar_lea.hbm %s13, %s1556
          %s1559 = sshll.u32 %s1549, 4
          %s1560 = int_to_ptr.vmem [resolvable:$true] %s1559
          %1562 = dma.vmem_to_hbm [thread:$0]  %s1560, 128, %s1557, %s1546
        $region80: #{tpu_custom_call.1} parent=71 // pred_fallthru
          _
      $region72: #{tpu_custom_call.1} parent=5 // pred_fallthru
        _
      %p1563 = scmp.le.s32.totalorder 2, %s25
      // Predicated region
      $region81: #{tpu_custom_call.1} parent=5 // pred_check
        %p1564 = pneg %p1563
      $region82: #{tpu_custom_call.1} parent=5 // pred_check_branch
        %1566 = sbr.rel (%p1564) target = $region84
      $region83: #{tpu_custom_call.1} parent=5 // pred_region
        %s1567 = ssub.s32 %s25, 2
        // Predicated region
        $region85: #{tpu_custom_call.1} parent=83 // pred_check
          %p1568 = pneg %p332
        $region86: #{tpu_custom_call.1} parent=83 // pred_check_branch
          %1570 = sbr.rel (%p1568) target = $region88
        $region87: #{tpu_custom_call.1} parent=83 // pred_region
          %s1571 = sand.u32 %s317, 1
          %s1572 = scalar_lea.sflag [#allocation4], %s1571
          %s1573 = sand.u32 %s317, 1
          %s1574 = smul.addr %s1573, 8
          %s1575 = scalar_lea.vmem [#allocation5], %s1574
          %1576 = dma.done %s1572, 128
        $region88: #{tpu_custom_call.1} parent=83 // pred_fallthru
          _
      $region84: #{tpu_custom_call.1} parent=5 // pred_fallthru
        _
    $region6: #{tpu_custom_call.1} parent=1 // loop_footer
      %s29 = sadd.s32 1, %s25
    $region7: #{tpu_custom_call.1} parent=1 // loop_footer_branch
      %24 = sbr.rel target = $region3
    $region8: #{tpu_custom_call.1} parent=1 // loop_exit
      _
    %1577 = vsyncpa [#allocation3], 1
    %s1578 = scalar_lea.sflag [#allocation3], 1
    %1579 = vsyncpa %s1578, 1
    %1580 = vsyncpa [#allocation4], 1
    %s1581 = scalar_lea.sflag [#allocation4], 1
    %1582 = vsyncpa %s1581, 1

</llo_original>
